<compile_context>
chip_gen: v7x
topology: tpu7x:2x2x1
jax: 0.10.0
libtpu: 0.0.40
codegen_flags: <defaults>
</compile_context>

<pallas_src>
import functools

import jax
import jax.numpy as jnp
from jax import lax
from jax.experimental import pallas as pl
from jax.experimental.pallas import tpu as pltpu

_EPS_NORM = 1e-12           # F.normalize eps (clamp on the L2 norm)
_INV_EPS_NORM = 1e12        # 1 / _EPS_NORM
_EPS_ALPHA = 1e-8           # eps added to sum(alphas)


def _feat_index_map(b, c, *, last_chunk):
    # Chunk index clamps to the stage's last chunk; when the block index does
    # not change between steps the pipeline skips the re-copy.
    return (b, 0, jnp.minimum(c, last_chunk))


def _weight_index_map(b, c):
    return (0, 0)


def _out_index_map(b, c):
    return (b, 0, 0)


def _normalized_sc(g):
    """g: (base, base) f32 un-normalized Gram.  Applies F.normalize folding:
    sc[a,b] = g[a,b] / (max(sqrt(g[a,a]),1e-12) * max(sqrt(g[b,b]),1e-12))."""
    base = g.shape[0]
    row = lax.broadcasted_iota(jnp.int32, (base, base), 0)
    col = lax.broadcasted_iota(jnp.int32, (base, base), 1)
    masked = jnp.where(row == col, g, 0.0)
    d_col = jnp.sum(masked, axis=1, keepdims=True)          # diag as (base, 1)
    d_row = jnp.sum(masked, axis=0, keepdims=True)          # diag as (1, base)
    inv_col = jnp.minimum(lax.rsqrt(d_col), _INV_EPS_NORM)  # EUP rsqrt
    inv_row = jnp.minimum(lax.rsqrt(d_row), _INV_EPS_NORM)
    return g * inv_col * inv_row


def _make_kernel(stage_meta, base, num_chunk_steps):
    num_stages = len(stage_meta)

    def kernel(*refs):
        alpha_ref = refs[0]                        # (num_stages,) f32 in SMEM
        stage_refs = refs[1:1 + 2 * num_stages]    # x0, w0, x1, w1, ...
        o_ref = refs[1 + 2 * num_stages]           # (1, base, base) f32, resident over c
        scratch_refs = refs[2 + 2 * num_stages:]   # per chunked stage: (C,C)/(base,base) f32

        c = pl.program_id(1)

        @pl.when(c == 0)
        def _init():
            o_ref[0] = jnp.zeros((base, base), jnp.float32)
            for s in scratch_refs:
                s[...] = jnp.zeros(s.shape, s.dtype)

        for i, meta in enumerate(stage_meta):
            x_ref = stage_refs[2 * i]       # (1, C, blk)  HW(-chunk) on lanes
            w_ref = stage_refs[2 * i + 1]   # (base, C)
            n_chunks = meta["n_chunks"]
            small_c = meta["small_c"]

            def chunk_gram(x, w, small_c=small_c):
                # Un-normalized contribution of one HW chunk (f32 accumulation).
                if small_c:
                    # Contract the long HW axis once at CxC.
                    return lax.dot_general(x, x, (((1,), (1,)), ((), ())),
                                           preferred_element_type=jnp.float32)   # (C, C)
                y = jnp.dot(w, x)   # 1x1 conv; stays in the input dtype (bf16 MXU-native)
                return lax.dot_general(y, y, (((1,), (1,)), ((), ())),
                                       preferred_element_type=jnp.float32)       # (base, base)

            def finish(acc, w, small_c=small_c):
                if small_c:
                    wf = w.astype(jnp.float32)
                    wxx = jnp.dot(wf, acc, preferred_element_type=jnp.float32)   # (base, C)
                    g = lax.dot_general(wxx, wf, (((1,), (1,)), ((), ())),
                                        preferred_element_type=jnp.float32)      # (base, base)
                else:
                    g = acc
                return _normalized_sc(g)

            if n_chunks == 1:
                # Whole stage resident in one block: conv + Gram + normalize inline.
                @pl.when(c == 0)
                def _single(i=i, x_ref=x_ref, w_ref=w_ref,
                            chunk_gram=chunk_gram, finish=finish):
                    w = w_ref[...]
                    sc = finish(chunk_gram(x_ref[0], w), w)
                    o_ref[0] += alpha_ref[i] * sc
            else:
                acc_ref = scratch_refs[meta["scratch_idx"]]

                def _accum(x_ref=x_ref, w_ref=w_ref, acc_ref=acc_ref,
                           chunk_gram=chunk_gram, meta=meta):
                    x = x_ref[0]
                    if meta["ragged"]:
                        # Zero the padded lanes of the last (partial) HW chunk.
                        lane = lax.broadcasted_iota(jnp.int32, x.shape, 1)
                        x = jnp.where(lane < meta["HW"] - c * meta["blk"], x, 0)
                    acc_ref[...] += chunk_gram(x, w_ref[...])

                if n_chunks == num_chunk_steps:
                    _accum()
                else:
                    pl.when(c < n_chunks)(_accum)

                @pl.when(c == n_chunks - 1)
                def _flush(i=i, w_ref=w_ref, acc_ref=acc_ref, finish=finish):
                    sc = finish(acc_ref[...], w_ref[...])
                    o_ref[0] += alpha_ref[i] * sc

        @pl.when(c == num_chunk_steps - 1)
        def _scale():
            alpha_sum = alpha_ref[0]
            for j in range(1, num_stages):
                alpha_sum = alpha_sum + alpha_ref[j]
            o_ref[0] = o_ref[0] * (1.0 / (alpha_sum + jnp.float32(_EPS_ALPHA)))

    return kernel


def skip_sc_aggregator(skip_features, conv_weights, alphas, *,
                       compute_dtype=None, hw_chunk=None):
    """skip_features: list of NCHW arrays (B, C_i, H_i, W_i).
    conv_weights: list of (base, C_i) arrays (== Conv2d.weight[:, :, 0, 0]).
    alphas: (num_stages,).
    compute_dtype: optional MXU feed dtype (e.g. jnp.bfloat16); Gram stays f32.
    hw_chunk: optional HW tile (multiple of 128 lanes) to cap VMEM (v7x)."""
    num_stages = len(skip_features)
    B = skip_features[0].shape[0]
    base = conv_weights[0].shape[0]

    # Auto-enable HW chunking when the double-buffered feature working set would
    # blow past v7x's 64 MiB VMEM (and the default scoped limits everywhere).
    if hw_chunk is None:
        itemsize = (jnp.dtype(compute_dtype).itemsize if compute_dtype is not None
                    else jnp.dtype(skip_features[0].dtype).itemsize)
        sum_c = sum(int(f.shape[1]) for f in skip_features)
        resident = 2 * itemsize * sum(int(f.shape[1]) * int(f.shape[2]) * int(f.shape[3])
                                      for f in skip_features)
        budget = 24 << 20
        if resident > budget:
            hw_chunk = max(512, (budget // (2 * itemsize * sum_c)) // 128 * 128)

    args = [alphas.astype(jnp.float32)]
    in_specs = [pl.BlockSpec(memory_space=pltpu.MemorySpace.SMEM)]
    scratch_shapes = []
    stage_meta = []
    flops = 0
    bytes_accessed = alphas.size * 4 + B * base * base * 4
    vmem_bytes = 2 * base * base * 4              # double-buffered output block

    for feat, w in zip(skip_features, conv_weights):
        b_, C, H, W = feat.shape
        assert b_ == B and w.shape == (base, C)
        HW = H * W
        # Free reshape NCHW -> (B, C, HW); HW on the 128-lane axis, no transpose.
        x = feat.reshape(B, C, HW)
        if compute_dtype is not None:
            x = x.astype(compute_dtype)
            w = w.astype(compute_dtype)
        itemsize = x.dtype.itemsize

        if hw_chunk is not None and HW > hw_chunk:
            if hw_chunk % 128 != 0:
                raise ValueError("hw_chunk must be a multiple of 128 lanes")
            blk, n_chunks = int(hw_chunk), pl.cdiv(HW, int(hw_chunk))
        else:
            blk, n_chunks = HW, 1

        small_c = C < base
        scratch_idx = None
        if n_chunks > 1:
            scratch_idx = len(scratch_shapes)
            d = C if small_c else base
            scratch_shapes.append(pltpu.VMEM((d, d), jnp.float32))
            vmem_bytes += d * d * 4

        stage_meta.append(dict(C=C, HW=HW, blk=blk, n_chunks=n_chunks,
                               small_c=small_c, scratch_idx=scratch_idx,
                               ragged=(HW % blk != 0)))

        in_specs.append(pl.BlockSpec(
            (1, C, blk), functools.partial(_feat_index_map, last_chunk=n_chunks - 1)))
        in_specs.append(pl.BlockSpec((base, C), _weight_index_map))
        args += [x, w]

        vmem_bytes += 2 * (C * blk + base * C) * itemsize   # double-buffered blocks
        bytes_accessed += (B * C * HW + base * C) * itemsize
        if small_c:
            flops += B * (2 * C * C * HW + 2 * base * C * C + 2 * base * base * C)
        else:
            flops += B * (2 * base * C * HW + 2 * base * base * HW)

    num_chunk_steps = max(m["n_chunks"] for m in stage_meta)

    # Scoped-VMEM request: footprint + headroom (defaults are well below physical
    # on v5e/v6e); clamp to v7x's 64 MiB physical budget.
    vmem_limit = int(min(max(1.5 * vmem_bytes + (2 << 20), 16 << 20), 64 << 20))

    # TODO(synk): on v7x, try pltpu.CORE_PARALLEL on the batch axis (2 TCs/chip).
    return pl.pallas_call(
        _make_kernel(stage_meta, base, num_chunk_steps),
        out_shape=jax.ShapeDtypeStruct((B, base, base), jnp.float32),
        grid=(B, num_chunk_steps),
        in_specs=in_specs,
        out_specs=pl.BlockSpec((1, base, base), _out_index_map),
        scratch_shapes=scratch_shapes,
        compiler_params=pltpu.CompilerParams(
            dimension_semantics=("parallel", "arbitrary"),
            vmem_limit_bytes=vmem_limit),
        cost_estimate=pl.CostEstimate(
            flops=int(flops),
            transcendentals=int(B * num_stages * 2 * base),
            bytes_accessed=int(bytes_accessed)),
    )(*args)


def reference(skip_features, conv_weights, alphas):
    eps = 1e-8
    sum_sc = None
    for i, feat in enumerate(skip_features):
        B, C, H, W = feat.shape
        u = jnp.einsum("oc,bchw->bohw", conv_weights[i], feat)
        uf = u.reshape(B, -1, H * W)
        n = jnp.sqrt(jnp.sum(uf * uf, axis=-1, keepdims=True))
        uf = uf / jnp.maximum(n, 1e-12)
        sc = jnp.einsum("bis,bjs->bij", uf, uf)
        contrib = alphas[i] * sc
        sum_sc = contrib if sum_sc is None else sum_sc + contrib
    return sum_sc / (jnp.sum(alphas) + eps)


if __name__ == "__main__":
    key = jax.random.PRNGKey(0)
    B = 2
    base_channel = 32
    skip_in_channels = [4, 8, 48]    # last stage exercises the C >= base path
    spatials = [16, 8, 12]

    keys = jax.random.split(key, 2 * len(skip_in_channels))
    skip_features, conv_weights = [], []
    for i, (c, s) in enumerate(zip(skip_in_channels, spatials)):
        skip_features.append(
            jax.random.normal(keys[2 * i], (B, c, s, s), dtype=jnp.float32))
        # deterministic stand-in for nn.Conv2d(c, base_channel, 1, bias=False).weight
        conv_weights.append(
            jax.random.normal(keys[2 * i + 1], (base_channel, c), dtype=jnp.float32) * 0.1)
    alphas = jnp.ones((len(skip_in_channels),), dtype=jnp.float32)

    ref = reference(skip_features, conv_weights, alphas)

    # 1) default path: grid=(B, 1), every stage resident, f32 (bit-faithful math)
    out = jax.block_until_ready(
        jax.jit(skip_sc_aggregator)(skip_features, conv_weights, alphas))
    assert out.shape == (B, base_channel, base_channel)
    assert jnp.allclose(out, ref, atol=1e-4, rtol=1e-4), "f32 mismatch vs reference"

    # 2) HW-chunked path (the v7x VMEM-cap mechanism), forced small chunk to
    #    exercise multi-chunk accumulation + ragged-lane masking.
    out_chunk = jax.block_until_ready(
        jax.jit(functools.partial(skip_sc_aggregator, hw_chunk=128))(
            skip_features, conv_weights, alphas))
    assert jnp.allclose(out_chunk, ref, atol=1e-3, rtol=1e-3), "chunked mismatch"

    # 3) bf16 MXU feed: half the DMA bytes, bf16-native MXU; Gram accumulation f32.
    out_bf16 = jax.block_until_ready(
        jax.jit(functools.partial(skip_sc_aggregator, compute_dtype=jnp.bfloat16))(
            skip_features, conv_weights, alphas))
    assert jnp.allclose(out_bf16, ref, atol=5e-2, rtol=5e-2), "bf16 mismatch"

    print("KERNEL_OK")
</pallas_src>

<mosaic_0001>
module attributes {stable_mosaic.version = 11 : i64} {
  func.func @kernel(%arg0: i32, %arg1: i32, %arg2: memref<3xf32, #tpu.memory_space<smem>>, %arg3: memref<1x4x256xf32, #tpu.memory_space<vmem>>, %arg4: memref<32x4xf32, #tpu.memory_space<vmem>>, %arg5: memref<1x8x64xf32, #tpu.memory_space<vmem>>, %arg6: memref<32x8xf32, #tpu.memory_space<vmem>>, %arg7: memref<1x48x144xf32, #tpu.memory_space<vmem>>, %arg8: memref<32x48xf32, #tpu.memory_space<vmem>>, %arg9: memref<1x32x32xf32, #tpu.memory_space<vmem>>) attributes {dimension_semantics = [#tpu.dimension_semantics<parallel>, #tpu.dimension_semantics<arbitrary>], iteration_bounds = array<i64: 2, 1>, scalar_prefetch = 0 : i64, scratch_operands = 0 : i64, tpu.core_type = #tpu.core_type<tc>, window_params = [{transform_indices = @transform_0, window_bounds = array<i64: 3>}, {transform_indices = @transform_1, window_bounds = array<i64: 1, 4, 256>}, {pipeline_mode = #tpu.pipeline_mode<synchronous>, transform_indices = @transform_2, window_bounds = array<i64: 32, 4>}, {transform_indices = @transform_3, window_bounds = array<i64: 1, 8, 64>}, {pipeline_mode = #tpu.pipeline_mode<synchronous>, transform_indices = @transform_4, window_bounds = array<i64: 32, 8>}, {transform_indices = @transform_5, window_bounds = array<i64: 1, 48, 144>}, {pipeline_mode = #tpu.pipeline_mode<synchronous>, transform_indices = @transform_6, window_bounds = array<i64: 32, 48>}, {transform_indices = @transform_7, window_bounds = array<i64: 1, 32, 32>}]} {
    %c0_i32 = arith.constant 0 : i32
    %0 = arith.cmpi eq, %arg1, %c0_i32 : i32
    %1 = arith.extui %0 : i1 to i32
    %c0_i32_0 = arith.constant 0 : i32
    %2 = arith.cmpi ne, %1, %c0_i32_0 : i32
    scf.if %2 {
      %cst = arith.constant 0.000000e+00 : f32
      %15 = vector.broadcast %cst : f32 to vector<32x32xf32>
      %c0 = arith.constant 0 : index
      %c0_9 = arith.constant 0 : index
      %c0_10 = arith.constant 0 : index
      %16 = vector.load %arg9[%c0, %c0_9, %c0_10] : memref<1x32x32xf32, #tpu.memory_space<vmem>>, vector<1x32x32xf32>
      %17 = vector.shape_cast %16 : vector<1x32x32xf32> to vector<32x32xf32>
      %18 = vector.shape_cast %15 : vector<32x32xf32> to vector<1x32x32xf32>
      tpu.vector_store %arg9[%c0, %c0_9, %c0_10], %18 {strides = array<i32>} : memref<1x32x32xf32, #tpu.memory_space<vmem>>, vector<1x32x32xf32>,
    } else {
    }
    %c0_i32_1 = arith.constant 0 : i32
    %3 = arith.cmpi eq, %arg1, %c0_i32_1 : i32
    %4 = arith.extui %3 : i1 to i32
    %c0_i32_2 = arith.constant 0 : i32
    %5 = arith.cmpi ne, %4, %c0_i32_2 : i32
    scf.if %5 {
      %c0 = arith.constant 0 : index
      %c0_9 = arith.constant 0 : index
      %15 = vector.load %arg4[%c0, %c0_9] : memref<32x4xf32, #tpu.memory_space<vmem>>, vector<32x4xf32>
      %c0_10 = arith.constant 0 : index
      %c0_11 = arith.constant 0 : index
      %c0_12 = arith.constant 0 : index
      %16 = vector.load %arg3[%c0_10, %c0_11, %c0_12] : memref<1x4x256xf32, #tpu.memory_space<vmem>>, vector<1x4x256xf32>
      %17 = vector.shape_cast %16 : vector<1x4x256xf32> to vector<4x256xf32>
      %cst = arith.constant dense<0.000000e+00> : vector<4x4xf32>
      %18 = tpu.matmul %17, %17, %cst {dimension_numbers = #tpu.dot_dimension_numbers<[1], [1], [0], [0], [0, 0, 1, 0], [], []>} : vector<4x256xf32>, vector<4x256xf32>, vector<4x4xf32> -> vector<4x4xf32>
      %cst_13 = arith.constant dense<0.000000e+00> : vector<32x4xf32>
      %19 = tpu.matmul %15, %18, %cst_13 {dimension_numbers = #tpu.dot_dimension_numbers<[1], [0], [0], [1], [0, 0, 1, 1], [], []>} : vector<32x4xf32>, vector<4x4xf32>, vector<32x4xf32> -> vector<32x4xf32>
      %cst_14 = arith.constant dense<0.000000e+00> : vector<32x32xf32>
      %20 = tpu.matmul %19, %15, %cst_14 {dimension_numbers = #tpu.dot_dimension_numbers<[1], [1], [0], [0], [0, 0, 1, 0], [], []>} : vector<32x4xf32>, vector<32x4xf32>, vector<32x32xf32> -> vector<32x32xf32>
      %21 = tpu.iota {dimensions = array<i32: 0>} : vector<32x32xi32>
      %22 = tpu.iota {dimensions = array<i32: 1>} : vector<32x32xi32>
      %23 = arith.cmpi eq, %21, %22 : vector<32x32xi32>
      %cst_15 = arith.constant 0.000000e+00 : f32
      %24 = vector.broadcast %cst_15 : f32 to vector<32x32xf32>
      %25 = arith.select %23, %20, %24 : vector<32x32xi1>, vector<32x32xf32>
      %cst_16 = arith.constant dense<0.000000e+00> : vector<32xf32>
      %26 = vector.multi_reduction <add>, %25, %cst_16 [1] : vector<32x32xf32> to vector<32xf32>
      %27 = vector.shape_cast %26 : vector<32xf32> to vector<32x1xf32>
      %cst_17 = arith.constant dense<0.000000e+00> : vector<32xf32>
      %28 = vector.multi_reduction <add>, %25, %cst_17 [0] : vector<32x32xf32> to vector<32xf32>
      %29 = vector.shape_cast %28 : vector<32xf32> to vector<1x32xf32>
      %30 = math.rsqrt %27 : vector<32x1xf32>
      %cst_18 = arith.constant 9.99999995E+11 : f32
      %31 = vector.broadcast %cst_18 : f32 to vector<32x1xf32>
      %32 = arith.minimumf %30, %31 : vector<32x1xf32>
      %33 = math.rsqrt %29 : vector<1x32xf32>
      %cst_19 = arith.constant 9.99999995E+11 : f32
      %34 = vector.broadcast %cst_19 : f32 to vector<1x32xf32>
      %35 = arith.minimumf %33, %34 : vector<1x32xf32>
      %36 = vector.broadcast %32 : vector<32x1xf32> to vector<32x32xf32>
      %37 = arith.mulf %20, %36 : vector<32x32xf32>
      %38 = vector.broadcast %35 : vector<1x32xf32> to vector<32x32xf32>
      %39 = arith.mulf %37, %38 : vector<32x32xf32>
      %c0_20 = arith.constant 0 : index
      %c0_21 = arith.constant 0 : index
      %c0_22 = arith.constant 0 : index
      %40 = vector.load %arg9[%c0_20, %c0_21, %c0_22] : memref<1x32x32xf32, #tpu.memory_space<vmem>>, vector<1x32x32xf32>
      %41 = vector.shape_cast %40 : vector<1x32x32xf32> to vector<32x32xf32>
      %c0_23 = arith.constant 0 : index
      %42 = memref.load %arg2[%c0_23] : memref<3xf32, #tpu.memory_space<smem>>
      %43 = vector.broadcast %42 : f32 to vector<32x32xf32>
      %44 = arith.mulf %43, %39 : vector<32x32xf32>
      %45 = arith.addf %41, %44 : vector<32x32xf32>
      %c0_24 = arith.constant 0 : index
      %c0_25 = arith.constant 0 : index
      %c0_26 = arith.constant 0 : index
      %46 = vector.load %arg9[%c0_24, %c0_25, %c0_26] : memref<1x32x32xf32, #tpu.memory_space<vmem>>, vector<1x32x32xf32>
      %47 = vector.shape_cast %46 : vector<1x32x32xf32> to vector<32x32xf32>
      %48 = vector.shape_cast %45 : vector<32x32xf32> to vector<1x32x32xf32>
      tpu.vector_store %arg9[%c0_24, %c0_25, %c0_26], %48 {strides = array<i32>} : memref<1x32x32xf32, #tpu.memory_space<vmem>>, vector<1x32x32xf32>,
    } else {
    }
    %c0_i32_3 = arith.constant 0 : i32
    %6 = arith.cmpi eq, %arg1, %c0_i32_3 : i32
    %7 = arith.extui %6 : i1 to i32
    %c0_i32_4 = arith.constant 0 : i32
    %8 = arith.cmpi ne, %7, %c0_i32_4 : i32
    scf.if %8 {
      %c0 = arith.constant 0 : index
      %c0_9 = arith.constant 0 : index
      %15 = vector.load %arg6[%c0, %c0_9] : memref<32x8xf32, #tpu.memory_space<vmem>>, vector<32x8xf32>
      %c0_10 = arith.constant 0 : index
      %c0_11 = arith.constant 0 : index
      %c0_12 = arith.constant 0 : index
      %16 = vector.load %arg5[%c0_10, %c0_11, %c0_12] : memref<1x8x64xf32, #tpu.memory_space<vmem>>, vector<1x8x64xf32>
      %17 = vector.shape_cast %16 : vector<1x8x64xf32> to vector<8x64xf32>
      %cst = arith.constant dense<0.000000e+00> : vector<8x8xf32>
      %18 = tpu.matmul %17, %17, %cst {dimension_numbers = #tpu.dot_dimension_numbers<[1], [1], [0], [0], [0, 0, 1, 0], [], []>} : vector<8x64xf32>, vector<8x64xf32>, vector<8x8xf32> -> vector<8x8xf32>
      %cst_13 = arith.constant dense<0.000000e+00> : vector<32x8xf32>
      %19 = tpu.matmul %15, %18, %cst_13 {dimension_numbers = #tpu.dot_dimension_numbers<[1], [0], [0], [1], [0, 0, 1, 1], [], []>} : vector<32x8xf32>, vector<8x8xf32>, vector<32x8xf32> -> vector<32x8xf32>
      %cst_14 = arith.constant dense<0.000000e+00> : vector<32x32xf32>
      %20 = tpu.matmul %19, %15, %cst_14 {dimension_numbers = #tpu.dot_dimension_numbers<[1], [1], [0], [0], [0, 0, 1, 0], [], []>} : vector<32x8xf32>, vector<32x8xf32>, vector<32x32xf32> -> vector<32x32xf32>
      %21 = tpu.iota {dimensions = array<i32: 0>} : vector<32x32xi32>
      %22 = tpu.iota {dimensions = array<i32: 1>} : vector<32x32xi32>
      %23 = arith.cmpi eq, %21, %22 : vector<32x32xi32>
      %cst_15 = arith.constant 0.000000e+00 : f32
      %24 = vector.broadcast %cst_15 : f32 to vector<32x32xf32>
      %25 = arith.select %23, %20, %24 : vector<32x32xi1>, vector<32x32xf32>
      %cst_16 = arith.constant dense<0.000000e+00> : vector<32xf32>
      %26 = vector.multi_reduction <add>, %25, %cst_16 [1] : vector<32x32xf32> to vector<32xf32>
      %27 = vector.shape_cast %26 : vector<32xf32> to vector<32x1xf32>
      %cst_17 = arith.constant dense<0.000000e+00> : vector<32xf32>
      %28 = vector.multi_reduction <add>, %25, %cst_17 [0] : vector<32x32xf32> to vector<32xf32>
      %29 = vector.shape_cast %28 : vector<32xf32> to vector<1x32xf32>
      %30 = math.rsqrt %27 : vector<32x1xf32>
      %cst_18 = arith.constant 9.99999995E+11 : f32
      %31 = vector.broadcast %cst_18 : f32 to vector<32x1xf32>
      %32 = arith.minimumf %30, %31 : vector<32x1xf32>
      %33 = math.rsqrt %29 : vector<1x32xf32>
      %cst_19 = arith.constant 9.99999995E+11 : f32
      %34 = vector.broadcast %cst_19 : f32 to vector<1x32xf32>
      %35 = arith.minimumf %33, %34 : vector<1x32xf32>
      %36 = vector.broadcast %32 : vector<32x1xf32> to vector<32x32xf32>
      %37 = arith.mulf %20, %36 : vector<32x32xf32>
      %38 = vector.broadcast %35 : vector<1x32xf32> to vector<32x32xf32>
      %39 = arith.mulf %37, %38 : vector<32x32xf32>
      %c0_20 = arith.constant 0 : index
      %c0_21 = arith.constant 0 : index
      %c0_22 = arith.constant 0 : index
      %40 = vector.load %arg9[%c0_20, %c0_21, %c0_22] : memref<1x32x32xf32, #tpu.memory_space<vmem>>, vector<1x32x32xf32>
      %41 = vector.shape_cast %40 : vector<1x32x32xf32> to vector<32x32xf32>
      %c1 = arith.constant 1 : index
      %42 = memref.load %arg2[%c1] : memref<3xf32, #tpu.memory_space<smem>>
      %43 = vector.broadcast %42 : f32 to vector<32x32xf32>
      %44 = arith.mulf %43, %39 : vector<32x32xf32>
      %45 = arith.addf %41, %44 : vector<32x32xf32>
      %c0_23 = arith.constant 0 : index
      %c0_24 = arith.constant 0 : index
      %c0_25 = arith.constant 0 : index
      %46 = vector.load %arg9[%c0_23, %c0_24, %c0_25] : memref<1x32x32xf32, #tpu.memory_space<vmem>>, vector<1x32x32xf32>
      %47 = vector.shape_cast %46 : vector<1x32x32xf32> to vector<32x32xf32>
      %48 = vector.shape_cast %45 : vector<32x32xf32> to vector<1x32x32xf32>
      tpu.vector_store %arg9[%c0_23, %c0_24, %c0_25], %48 {strides = array<i32>} : memref<1x32x32xf32, #tpu.memory_space<vmem>>, vector<1x32x32xf32>,
    } else {
    }
    %c0_i32_5 = arith.constant 0 : i32
    %9 = arith.cmpi eq, %arg1, %c0_i32_5 : i32
    %10 = arith.extui %9 : i1 to i32
    %c0_i32_6 = arith.constant 0 : i32
    %11 = arith.cmpi ne, %10, %c0_i32_6 : i32
    scf.if %11 {
      %c0 = arith.constant 0 : index
      %c0_9 = arith.constant 0 : index
      %15 = vector.load %arg8[%c0, %c0_9] : memref<32x48xf32, #tpu.memory_space<vmem>>, vector<32x48xf32>
      %c0_10 = arith.constant 0 : index
      %c0_11 = arith.constant 0 : index
      %c0_12 = arith.constant 0 : index
      %16 = vector.load %arg7[%c0_10, %c0_11, %c0_12] : memref<1x48x144xf32, #tpu.memory_space<vmem>>, vector<1x48x144xf32>
      %17 = vector.shape_cast %16 : vector<1x48x144xf32> to vector<48x144xf32>
      %cst = arith.constant dense<0.000000e+00> : vector<32x144xf32>
      %18 = tpu.matmul %15, %17, %cst {dimension_numbers = #tpu.dot_dimension_numbers<[1], [0], [0], [1], [0, 0, 1, 1], [], []>} : vector<32x48xf32>, vector<48x144xf32>, vector<32x144xf32> -> vector<32x144xf32>
      %cst_13 = arith.constant dense<0.000000e+00> : vector<32x32xf32>
      %19 = tpu.matmul %18, %18, %cst_13 {dimension_numbers = #tpu.dot_dimension_numbers<[1], [1], [0], [0], [0, 0, 1, 0], [], []>} : vector<32x144xf32>, vector<32x144xf32>, vector<32x32xf32> -> vector<32x32xf32>
      %20 = tpu.iota {dimensions = array<i32: 0>} : vector<32x32xi32>
      %21 = tpu.iota {dimensions = array<i32: 1>} : vector<32x32xi32>
      %22 = arith.cmpi eq, %20, %21 : vector<32x32xi32>
      %cst_14 = arith.constant 0.000000e+00 : f32
      %23 = vector.broadcast %cst_14 : f32 to vector<32x32xf32>
      %24 = arith.select %22, %19, %23 : vector<32x32xi1>, vector<32x32xf32>
      %cst_15 = arith.constant dense<0.000000e+00> : vector<32xf32>
      %25 = vector.multi_reduction <add>, %24, %cst_15 [1] : vector<32x32xf32> to vector<32xf32>
      %26 = vector.shape_cast %25 : vector<32xf32> to vector<32x1xf32>
      %cst_16 = arith.constant dense<0.000000e+00> : vector<32xf32>
      %27 = vector.multi_reduction <add>, %24, %cst_16 [0] : vector<32x32xf32> to vector<32xf32>
      %28 = vector.shape_cast %27 : vector<32xf32> to vector<1x32xf32>
      %29 = math.rsqrt %26 : vector<32x1xf32>
      %cst_17 = arith.constant 9.99999995E+11 : f32
      %30 = vector.broadcast %cst_17 : f32 to vector<32x1xf32>
      %31 = arith.minimumf %29, %30 : vector<32x1xf32>
      %32 = math.rsqrt %28 : vector<1x32xf32>
      %cst_18 = arith.constant 9.99999995E+11 : f32
      %33 = vector.broadcast %cst_18 : f32 to vector<1x32xf32>
      %34 = arith.minimumf %32, %33 : vector<1x32xf32>
      %35 = vector.broadcast %31 : vector<32x1xf32> to vector<32x32xf32>
      %36 = arith.mulf %19, %35 : vector<32x32xf32>
      %37 = vector.broadcast %34 : vector<1x32xf32> to vector<32x32xf32>
      %38 = arith.mulf %36, %37 : vector<32x32xf32>
      %c0_19 = arith.constant 0 : index
      %c0_20 = arith.constant 0 : index
      %c0_21 = arith.constant 0 : index
      %39 = vector.load %arg9[%c0_19, %c0_20, %c0_21] : memref<1x32x32xf32, #tpu.memory_space<vmem>>, vector<1x32x32xf32>
      %40 = vector.shape_cast %39 : vector<1x32x32xf32> to vector<32x32xf32>
      %c2 = arith.constant 2 : index
      %41 = memref.load %arg2[%c2] : memref<3xf32, #tpu.memory_space<smem>>
      %42 = vector.broadcast %41 : f32 to vector<32x32xf32>
      %43 = arith.mulf %42, %38 : vector<32x32xf32>
      %44 = arith.addf %40, %43 : vector<32x32xf32>
      %c0_22 = arith.constant 0 : index
      %c0_23 = arith.constant 0 : index
      %c0_24 = arith.constant 0 : index
      %45 = vector.load %arg9[%c0_22, %c0_23, %c0_24] : memref<1x32x32xf32, #tpu.memory_space<vmem>>, vector<1x32x32xf32>
      %46 = vector.shape_cast %45 : vector<1x32x32xf32> to vector<32x32xf32>
      %47 = vector.shape_cast %44 : vector<32x32xf32> to vector<1x32x32xf32>
      tpu.vector_store %arg9[%c0_22, %c0_23, %c0_24], %47 {strides = array<i32>} : memref<1x32x32xf32, #tpu.memory_space<vmem>>, vector<1x32x32xf32>,
    } else {
    }
    %c0_i32_7 = arith.constant 0 : i32
    %12 = arith.cmpi eq, %arg1, %c0_i32_7 : i32
    %13 = arith.extui %12 : i1 to i32
    %c0_i32_8 = arith.constant 0 : i32
    %14 = arith.cmpi ne, %13, %c0_i32_8 : i32
    scf.if %14 {
      %c0 = arith.constant 0 : index
      %15 = memref.load %arg2[%c0] : memref<3xf32, #tpu.memory_space<smem>>
      %c1 = arith.constant 1 : index
      %16 = memref.load %arg2[%c1] : memref<3xf32, #tpu.memory_space<smem>>
      %17 = arith.addf %15, %16 : f32
      %c2 = arith.constant 2 : index
      %18 = memref.load %arg2[%c2] : memref<3xf32, #tpu.memory_space<smem>>
      %19 = arith.addf %17, %18 : f32
      %c0_9 = arith.constant 0 : index
      %c0_10 = arith.constant 0 : index
      %c0_11 = arith.constant 0 : index
      %20 = vector.load %arg9[%c0_9, %c0_10, %c0_11] : memref<1x32x32xf32, #tpu.memory_space<vmem>>, vector<1x32x32xf32>
      %21 = vector.shape_cast %20 : vector<1x32x32xf32> to vector<32x32xf32>
      %cst = arith.constant 9.99999993E-9 : f32
      %22 = arith.addf %19, %cst : f32
      %cst_12 = arith.constant 1.000000e+00 : f32
      %23 = arith.divf %cst_12, %22 : f32
      %24 = vector.broadcast %23 : f32 to vector<32x32xf32>
      %25 = arith.mulf %21, %24 : vector<32x32xf32>
      %c0_13 = arith.constant 0 : index
      %c0_14 = arith.constant 0 : index
      %c0_15 = arith.constant 0 : index
      %26 = vector.load %arg9[%c0_13, %c0_14, %c0_15] : memref<1x32x32xf32, #tpu.memory_space<vmem>>, vector<1x32x32xf32>
      %27 = vector.shape_cast %26 : vector<1x32x32xf32> to vector<32x32xf32>
      %28 = vector.shape_cast %25 : vector<32x32xf32> to vector<1x32x32xf32>
      tpu.vector_store %arg9[%c0_13, %c0_14, %c0_15], %28 {strides = array<i32>} : memref<1x32x32xf32, #tpu.memory_space<vmem>>, vector<1x32x32xf32>,
    } else {
    }
    return
  }
  func.func @transform_0(%arg0: i32, %arg1: i32) -> i32 {
    %c0_i32 = arith.constant 0 : i32
    %c0_i32_0 = arith.constant 0 : i32
    return %c0_i32 : i32
  }
  func.func @transform_1(%arg0: i32, %arg1: i32) -> (i32, i32, i32) {
    %c0_i32 = arith.constant 0 : i32
    %0 = arith.minsi %arg1, %c0_i32 : i32
    %c0_i32_0 = arith.constant 0 : i32
    %c0_i32_1 = arith.constant 0 : i32
    return %arg0, %c0_i32_0, %0 : i32, i32, i32
  }
  func.func @transform_2(%arg0: i32, %arg1: i32) -> (i32, i32) {
    %c0_i32 = arith.constant 0 : i32
    %c0_i32_0 = arith.constant 0 : i32
    %c0_i32_1 = arith.constant 0 : i32
    return %c0_i32, %c0_i32_0 : i32, i32
  }
  func.func @transform_3(%arg0: i32, %arg1: i32) -> (i32, i32, i32) {
    %c0_i32 = arith.constant 0 : i32
    %0 = arith.minsi %arg1, %c0_i32 : i32
    %c0_i32_0 = arith.constant 0 : i32
    %c0_i32_1 = arith.constant 0 : i32
    return %arg0, %c0_i32_0, %0 : i32, i32, i32
  }
  func.func @transform_4(%arg0: i32, %arg1: i32) -> (i32, i32) {
    %c0_i32 = arith.constant 0 : i32
    %c0_i32_0 = arith.constant 0 : i32
    %c0_i32_1 = arith.constant 0 : i32
    return %c0_i32, %c0_i32_0 : i32, i32
  }
  func.func @transform_5(%arg0: i32, %arg1: i32) -> (i32, i32, i32) {
    %c0_i32 = arith.constant 0 : i32
    %0 = arith.minsi %arg1, %c0_i32 : i32
    %c0_i32_0 = arith.constant 0 : i32
    %c0_i32_1 = arith.constant 0 : i32
    return %arg0, %c0_i32_0, %0 : i32, i32, i32
  }
  func.func @transform_6(%arg0: i32, %arg1: i32) -> (i32, i32) {
    %c0_i32 = arith.constant 0 : i32
    %c0_i32_0 = arith.constant 0 : i32
    %c0_i32_1 = arith.constant 0 : i32
    return %c0_i32, %c0_i32_0 : i32, i32
  }
  func.func @transform_7(%arg0: i32, %arg1: i32) -> (i32, i32, i32) {
    %c0_i32 = arith.constant 0 : i32
    %c0_i32_0 = arith.constant 0 : i32
    %c0_i32_1 = arith.constant 0 : i32
    return %arg0, %c0_i32, %c0_i32_0 : i32, i32, i32
  }
}

</mosaic_0001>

<llo_original>
// kernel: skip_sc_aggregator.1
$region0: #{skip_sc_aggregator.1}
  #allocation0 [shape = 'u32[]', space=smem, size = 0x4, offset = 0x4, fixed_abs, tag = 'smem constant byte address 0x4 - core index']
  #allocation1 [shape = 'u32[144,128]{1,0:T(1,128)}', space=vmem, size = 0x12000, scoped, tag = 'internal scratch']
  %s0 = inlined_call_operand.vmem [shape: f32[3], index: 0, kind: input, shape index: {}]
  %s1 = inlined_call_operand.vmem [shape: f32[2,4,256], index: 1, kind: input, shape index: {}]
  %s2 = inlined_call_operand.vmem [shape: f32[32,4], index: 2, kind: input, shape index: {}]
  %s3 = inlined_call_operand.vmem [shape: f32[2,8,64], index: 3, kind: input, shape index: {}]
  %s4 = inlined_call_operand.vmem [shape: f32[32,8], index: 4, kind: input, shape index: {}]
  %s5 = inlined_call_operand.vmem [shape: f32[2,48,144], index: 5, kind: input, shape index: {}]
  %s6 = inlined_call_operand.vmem [shape: f32[32,48], index: 6, kind: input, shape index: {}]
  %s7 = inlined_call_operand.hbm [shape: f32[2,32,32], index: 7, kind: output, shape index: {}]
  %s8 = sld [smem:[#allocation0]]
  $region69: #{skip_sc_aggregator.1} parent=0
    _
  %s10 = ssub.s32 1, %s8
  %s11 = scalar_select 0, %s10, %s8
  $region1: #{skip_sc_aggregator.1} parent=0
    #allocation2 [shape = 'u8[512]{0}', space=smem, size = 0x200, scoped, tag = 'input window, operand 0, single buffered']
    #allocation3 [shape = 's32[2]{0}', space=sflag, size = 0x8, scoped, tag = 'scoped memory for skip_sc_aggregator.1']
    #allocation4 [shape = 's32[2]{0}', space=sflag, size = 0x8, scoped, tag = 'scoped memory for skip_sc_aggregator.1']
    #allocation5 [shape = 'u8[32768]{0}', space=vmem, size = 0x8000, scoped, tag = 'output window, operand 0']
    %12 = vsyncpa [#allocation4], 0
    %13 = vsyncpa [#allocation3], 0
    %s14 = scalar_lea.sflag [#allocation3], 1
    %15 = vsyncpa %s14, 0
    loop: start=0, step=1, limit=4
    $region2: #{skip_sc_aggregator.1} parent=1 // loop_pre_header
      _
    $region3: #{skip_sc_aggregator.1} parent=1 // loop_header
      %s17 = sphi 0, %s21
      %p18 = scmp.ge.s32.totalorder %s17, 4
      %s24 = sphi 0, %s36
      %s25 = sphi 0, %s32
      %s26 = sphi 0, %s24
      %s27 = sphi 0, %s25
      %s28 = sphi 0, %s26
      %s29 = sphi 0, %s27
      %s37 = sphi 0, %s37
      %s39 = sphi 0, %s37
      %s40 = sphi 0, %s39
      %s54 = sphi 0, %s40
      %s66 = sphi 0, %s68
      %s69 = sphi 0, %s66
      %s70 = sphi 0, %s69
      %s86 = sphi 0, %s70
      %s90 = sphi 0, %s90
      %s92 = sphi 0, %s90
      %s93 = sphi 0, %s92
      %s107 = sphi 0, %s93
      %s119 = sphi 0, %s121
      %s122 = sphi 0, %s119
      %s123 = sphi 0, %s122
      %s139 = sphi 0, %s123
      %s143 = sphi 0, %s143
      %s145 = sphi 0, %s143
      %s146 = sphi 0, %s145
      %s160 = sphi 0, %s146
      %s172 = sphi 0, %s174
      %s175 = sphi 0, %s172
      %s176 = sphi 0, %s175
      %s192 = sphi 0, %s176
      %s196 = sphi 0, %s196
      %s198 = sphi 0, %s196
      %s199 = sphi 0, %s198
      %s213 = sphi 0, %s199
      %s219 = sphi 0, %s221
      %s222 = sphi 0, %s219
      %s223 = sphi 0, %s222
      %s239 = sphi 0, %s223
    $region4: #{skip_sc_aggregator.1} parent=1 // loop_header_branch
      %20 = sbr.rel (%p18) target = $region8
    $region5: #{skip_sc_aggregator.1} parent=1 // loop_body
      %s22 = ssub.s32 %s17, 1
      %s23 = ssub.s32 %s17, 2
      %s30 = sadd.s32 1, %s25
      %p31 = scmp.ge.s32.totalorder %s30, 1
      %s32 = scalar_select %p31, 0, %s30
      %s33 = sadd.s32 1, %s24
      %s34 = scalar_select %p31, %s33, %s24
      %p35 = scmp.ge.s32.totalorder %s34, 2
      %s36 = scalar_select %p35, 0, %s34
      %s38 = sadd.s32 %s37, 1
      %p41 = scmp.eq.s32.totalorder %s17, 1
      %p42 = scmp.ne.s32.totalorder %s37, %s39
      %p43 = scmp.eq.s32.totalorder %s17, 0
      %p44 = por %p42, %p43
      %p45 = scmp.ne.s32.totalorder %s37, %s39
      %p46 = scmp.eq.s32.totalorder %s22, 1
      %p47 = por %p45, %p46
      %p48 = scmp.ne.s32.totalorder %s39, %s40
      %p49 = scmp.eq.s32.totalorder %s22, 0
      %p50 = por %p48, %p49
      %p51 = scmp.ne.s32.totalorder %s39, %s40
      %p52 = scmp.eq.s32.totalorder %s23, 1
      %p53 = por %p51, %p52
      %p55 = scmp.ne.s32.totalorder %s40, %s54
      %p56 = scmp.eq.s32.totalorder %s23, 0
      %p57 = por %p55, %p56
      %p58 = scmp.lt.s32.totalorder %s25, 0
      %s59 = scalar_select %p58, %s25, 0
      %p60 = scmp.lt.s32.totalorder %s32, 0
      %s61 = scalar_select %p60, %s32, 0
      %s62 = ssub.s32 %s24, %s36
      %s63 = ssub.s32 %s59, %s61
      %s64 = sor.u32 %s62, %s63
      %p65 = scmp.eq.s32.totalorder %s64, 0
      %s67 = sadd.s32 %s66, 1
      %s68 = scalar_select %p65, %s66, %s67
      %p71 = pneg %p65
      %p72 = scmp.eq.s32.totalorder %s17, 1
      %p73 = por %p71, %p72
      %p74 = scmp.ne.s32.totalorder %s66, %s69
      %p75 = scmp.eq.s32.totalorder %s17, 0
      %p76 = por %p74, %p75
      %p77 = scmp.ne.s32.totalorder %s66, %s69
      %p78 = scmp.eq.s32.totalorder %s22, 1
      %p79 = por %p77, %p78
      %p80 = scmp.ne.s32.totalorder %s69, %s70
      %p81 = scmp.eq.s32.totalorder %s22, 0
      %p82 = por %p80, %p81
      %p83 = scmp.ne.s32.totalorder %s69, %s70
      %p84 = scmp.eq.s32.totalorder %s23, 1
      %p85 = por %p83, %p84
      %p87 = scmp.ne.s32.totalorder %s70, %s86
      %p88 = scmp.eq.s32.totalorder %s23, 0
      %p89 = por %p87, %p88
      %s91 = sadd.s32 %s90, 1
      %p94 = scmp.eq.s32.totalorder %s17, 1
      %p95 = scmp.ne.s32.totalorder %s90, %s92
      %p96 = scmp.eq.s32.totalorder %s17, 0
      %p97 = por %p95, %p96
      %p98 = scmp.ne.s32.totalorder %s90, %s92
      %p99 = scmp.eq.s32.totalorder %s22, 1
      %p100 = por %p98, %p99
      %p101 = scmp.ne.s32.totalorder %s92, %s93
      %p102 = scmp.eq.s32.totalorder %s22, 0
      %p103 = por %p101, %p102
      %p104 = scmp.ne.s32.totalorder %s92, %s93
      %p105 = scmp.eq.s32.totalorder %s23, 1
      %p106 = por %p104, %p105
      %p108 = scmp.ne.s32.totalorder %s93, %s107
      %p109 = scmp.eq.s32.totalorder %s23, 0
      %p110 = por %p108, %p109
      %p111 = scmp.lt.s32.totalorder %s25, 0
      %s112 = scalar_select %p111, %s25, 0
      %p113 = scmp.lt.s32.totalorder %s32, 0
      %s114 = scalar_select %p113, %s32, 0
      %s115 = ssub.s32 %s24, %s36
      %s116 = ssub.s32 %s112, %s114
      %s117 = sor.u32 %s115, %s116
      %p118 = scmp.eq.s32.totalorder %s117, 0
      %s120 = sadd.s32 %s119, 1
      %s121 = scalar_select %p118, %s119, %s120
      %p124 = pneg %p118
      %p125 = scmp.eq.s32.totalorder %s17, 1
      %p126 = por %p124, %p125
      %p127 = scmp.ne.s32.totalorder %s119, %s122
      %p128 = scmp.eq.s32.totalorder %s17, 0
      %p129 = por %p127, %p128
      %p130 = scmp.ne.s32.totalorder %s119, %s122
      %p131 = scmp.eq.s32.totalorder %s22, 1
      %p132 = por %p130, %p131
      %p133 = scmp.ne.s32.totalorder %s122, %s123
      %p134 = scmp.eq.s32.totalorder %s22, 0
      %p135 = por %p133, %p134
      %p136 = scmp.ne.s32.totalorder %s122, %s123
      %p137 = scmp.eq.s32.totalorder %s23, 1
      %p138 = por %p136, %p137
      %p140 = scmp.ne.s32.totalorder %s123, %s139
      %p141 = scmp.eq.s32.totalorder %s23, 0
      %p142 = por %p140, %p141
      %s144 = sadd.s32 %s143, 1
      %p147 = scmp.eq.s32.totalorder %s17, 1
      %p148 = scmp.ne.s32.totalorder %s143, %s145
      %p149 = scmp.eq.s32.totalorder %s17, 0
      %p150 = por %p148, %p149
      %p151 = scmp.ne.s32.totalorder %s143, %s145
      %p152 = scmp.eq.s32.totalorder %s22, 1
      %p153 = por %p151, %p152
      %p154 = scmp.ne.s32.totalorder %s145, %s146
      %p155 = scmp.eq.s32.totalorder %s22, 0
      %p156 = por %p154, %p155
      %p157 = scmp.ne.s32.totalorder %s145, %s146
      %p158 = scmp.eq.s32.totalorder %s23, 1
      %p159 = por %p157, %p158
      %p161 = scmp.ne.s32.totalorder %s146, %s160
      %p162 = scmp.eq.s32.totalorder %s23, 0
      %p163 = por %p161, %p162
      %p164 = scmp.lt.s32.totalorder %s25, 0
      %s165 = scalar_select %p164, %s25, 0
      %p166 = scmp.lt.s32.totalorder %s32, 0
      %s167 = scalar_select %p166, %s32, 0
      %s168 = ssub.s32 %s24, %s36
      %s169 = ssub.s32 %s165, %s167
      %s170 = sor.u32 %s168, %s169
      %p171 = scmp.eq.s32.totalorder %s170, 0
      %s173 = sadd.s32 %s172, 1
      %s174 = scalar_select %p171, %s172, %s173
      %p177 = pneg %p171
      %p178 = scmp.eq.s32.totalorder %s17, 1
      %p179 = por %p177, %p178
      %p180 = scmp.ne.s32.totalorder %s172, %s175
      %p181 = scmp.eq.s32.totalorder %s17, 0
      %p182 = por %p180, %p181
      %p183 = scmp.ne.s32.totalorder %s172, %s175
      %p184 = scmp.eq.s32.totalorder %s22, 1
      %p185 = por %p183, %p184
      %p186 = scmp.ne.s32.totalorder %s175, %s176
      %p187 = scmp.eq.s32.totalorder %s22, 0
      %p188 = por %p186, %p187
      %p189 = scmp.ne.s32.totalorder %s175, %s176
      %p190 = scmp.eq.s32.totalorder %s23, 1
      %p191 = por %p189, %p190
      %p193 = scmp.ne.s32.totalorder %s176, %s192
      %p194 = scmp.eq.s32.totalorder %s23, 0
      %p195 = por %p193, %p194
      %s197 = sadd.s32 %s196, 1
      %p200 = scmp.eq.s32.totalorder %s17, 1
      %p201 = scmp.ne.s32.totalorder %s196, %s198
      %p202 = scmp.eq.s32.totalorder %s17, 0
      %p203 = por %p201, %p202
      %p204 = scmp.ne.s32.totalorder %s196, %s198
      %p205 = scmp.eq.s32.totalorder %s22, 1
      %p206 = por %p204, %p205
      %p207 = scmp.ne.s32.totalorder %s198, %s199
      %p208 = scmp.eq.s32.totalorder %s22, 0
      %p209 = por %p207, %p208
      %p210 = scmp.ne.s32.totalorder %s198, %s199
      %p211 = scmp.eq.s32.totalorder %s23, 1
      %p212 = por %p210, %p211
      %p214 = scmp.ne.s32.totalorder %s199, %s213
      %p215 = scmp.eq.s32.totalorder %s23, 0
      %p216 = por %p214, %p215
      %s217 = ssub.s32 %s24, %s36
      %p218 = scmp.eq.s32.totalorder %s217, 0
      %s220 = sadd.s32 %s219, 1
      %s221 = scalar_select %p218, %s219, %s220
      %p224 = pneg %p218
      %p225 = scmp.eq.s32.totalorder %s17, 1
      %p226 = por %p224, %p225
      %p227 = scmp.ne.s32.totalorder %s219, %s222
      %p228 = scmp.eq.s32.totalorder %s17, 0
      %p229 = por %p227, %p228
      %p230 = scmp.ne.s32.totalorder %s219, %s222
      %p231 = scmp.eq.s32.totalorder %s22, 1
      %p232 = por %p230, %p231
      %p233 = scmp.ne.s32.totalorder %s222, %s223
      %p234 = scmp.eq.s32.totalorder %s22, 0
      %p235 = por %p233, %p234
      %p236 = scmp.ne.s32.totalorder %s222, %s223
      %p237 = scmp.eq.s32.totalorder %s23, 1
      %p238 = por %p236, %p237
      %p240 = scmp.ne.s32.totalorder %s223, %s239
      %p241 = scmp.eq.s32.totalorder %s23, 0
      %p242 = por %p240, %p241
      %p243 = scmp.le.s32.totalorder 1, %s17
      %p244 = scmp.lt.s32.totalorder %s17, 3
      %p245 = pnand %p243, %p244
      %p246 = pneg %p245
      // Predicated region
      $region9: #{skip_sc_aggregator.1} parent=5 // pred_check
        _
      $region10: #{skip_sc_aggregator.1} parent=5 // pred_check_branch
        %248 = sbr.rel (%p245) target = $region12
      $region11: #{skip_sc_aggregator.1} parent=5 // pred_region
        %s249 = ssub.s32 %s17, 1
        // Predicated region
        $region13: #{skip_sc_aggregator.1} parent=11 // pred_check
          %p250 = pneg %p50
        $region14: #{skip_sc_aggregator.1} parent=11 // pred_check_branch
          %252 = sbr.rel (%p250) target = $region16
        $region15: #{skip_sc_aggregator.1} parent=11 // pred_region
          %s254 = ssub.s32 16, 16
          %255 = vsyncadd [#allocation4], %s254
          %s257 = sshll.u32 %s0, 4
          %s258 = int_to_ptr.vmem [resolvable:$true] %s257
          %260 = dma.vmem_to_smem %s258, 16, [#allocation2], [#allocation4]
        $region16: #{skip_sc_aggregator.1} parent=11 // pred_fallthru
          _
        // Predicated region
        $region17: #{skip_sc_aggregator.1} parent=11 // pred_check
          %p261 = pneg %p103
        $region18: #{skip_sc_aggregator.1} parent=11 // pred_check_branch
          %263 = sbr.rel (%p261) target = $region20
        $region19: #{skip_sc_aggregator.1} parent=11 // pred_region
          _
        $region20: #{skip_sc_aggregator.1} parent=11 // pred_fallthru
          _
        // Predicated region
        $region21: #{skip_sc_aggregator.1} parent=11 // pred_check
          %p264 = pneg %p156
        $region22: #{skip_sc_aggregator.1} parent=11 // pred_check_branch
          %266 = sbr.rel (%p264) target = $region24
        $region23: #{skip_sc_aggregator.1} parent=11 // pred_region
          _
        $region24: #{skip_sc_aggregator.1} parent=11 // pred_fallthru
          _
        // Predicated region
        $region25: #{skip_sc_aggregator.1} parent=11 // pred_check
          %p267 = pneg %p209
        $region26: #{skip_sc_aggregator.1} parent=11 // pred_check_branch
          %269 = sbr.rel (%p267) target = $region28
        $region27: #{skip_sc_aggregator.1} parent=11 // pred_region
          _
        $region28: #{skip_sc_aggregator.1} parent=11 // pred_fallthru
          _
      $region12: #{skip_sc_aggregator.1} parent=5 // pred_fallthru
        _
      %p270 = scmp.lt.s32.totalorder %s17, 2
      // Predicated region
      $region29: #{skip_sc_aggregator.1} parent=5 // pred_check
        %p271 = pneg %p270
      $region30: #{skip_sc_aggregator.1} parent=5 // pred_check_branch
        %273 = sbr.rel (%p271) target = $region32
      $region31: #{skip_sc_aggregator.1} parent=5 // pred_region
        // Predicated region
        $region33: #{skip_sc_aggregator.1} parent=31 // pred_check
          %p274 = pneg %p76
        $region34: #{skip_sc_aggregator.1} parent=31 // pred_check_branch
          %276 = sbr.rel (%p274) target = $region36
        $region35: #{skip_sc_aggregator.1} parent=31 // pred_region
          %p277 = scmp.lt.s32.totalorder %s25, 0
          %s278 = scalar_select %p277, %s25, 0
          %s279 = smul.u32 2, %s278
          %p280 = scmp.lt.s32.totalorder %s24, 1
          %s281 = scalar_select %p280, %s24, 1
          %p282 = scmp.lt.s32.totalorder %s279, 1
          %s283 = scalar_select %p282, %s279, 1
          %s284 = smul.addr %s281, 2
          %s285 = sadd.s32 %s283, %s284
          %s286 = smul.addr %s285, 4
          %s287 = scalar_lea.vmem %s1, %s286
          %p288 = scmp.lt.s32.totalorder %s25, 0
          %s289 = scalar_select %p288, %s25, 0
          %s290 = smul.u32 2, %s289
        $region36: #{skip_sc_aggregator.1} parent=31 // pred_fallthru
          _
        // Predicated region
        $region37: #{skip_sc_aggregator.1} parent=31 // pred_check
          %p291 = pneg %p129
        $region38: #{skip_sc_aggregator.1} parent=31 // pred_check_branch
          %293 = sbr.rel (%p291) target = $region40
        $region39: #{skip_sc_aggregator.1} parent=31 // pred_region
          %p294 = scmp.lt.s32.totalorder %s25, 0
          %s295 = scalar_select %p294, %s25, 0
          %p296 = scmp.lt.s32.totalorder %s24, 1
          %s297 = scalar_select %p296, %s24, 1
          %p298 = scmp.lt.s32.totalorder %s295, 0
          %s299 = scalar_select %p298, %s295, 0
          %s300 = sadd.s32 %s299, %s297
          %s301 = smul.addr %s300, 8
          %s302 = scalar_lea.vmem %s3, %s301
          %p303 = scmp.lt.s32.totalorder %s25, 0
          %s304 = scalar_select %p303, %s25, 0
        $region40: #{skip_sc_aggregator.1} parent=31 // pred_fallthru
          _
        // Predicated region
        $region41: #{skip_sc_aggregator.1} parent=31 // pred_check
          %p305 = pneg %p182
        $region42: #{skip_sc_aggregator.1} parent=31 // pred_check_branch
          %307 = sbr.rel (%p305) target = $region44
        $region43: #{skip_sc_aggregator.1} parent=31 // pred_region
          %p308 = scmp.lt.s32.totalorder %s25, 0
          %s309 = scalar_select %p308, %s25, 0
          %s310 = smul.u32 2, %s309
          %p311 = scmp.lt.s32.totalorder %s24, 1
          %s312 = scalar_select %p311, %s24, 1
          %p313 = scmp.lt.s32.totalorder %s310, 1
          %s314 = scalar_select %p313, %s310, 1
          %s315 = smul.addr %s312, 12
          %s316 = sadd.s32 %s314, %s315
          %s317 = smul.addr %s316, 8
          %s318 = scalar_lea.vmem %s5, %s317
          %p319 = scmp.lt.s32.totalorder %s25, 0
          %s320 = scalar_select %p319, %s25, 0
          %s321 = smul.u32 2, %s320
        $region44: #{skip_sc_aggregator.1} parent=31 // pred_fallthru
          _
      $region32: #{skip_sc_aggregator.1} parent=5 // pred_fallthru
        _
      %p322 = scmp.le.s32.totalorder 1, %s17
      %p323 = scmp.lt.s32.totalorder %s17, 3
      %p324 = pnand %p322, %p323
      %p325 = pneg %p324
      // Predicated region
      $region45: #{skip_sc_aggregator.1} parent=5 // pred_check
        _
      $region46: #{skip_sc_aggregator.1} parent=5 // pred_check_branch
        %327 = sbr.rel (%p324) target = $region48
      $region47: #{skip_sc_aggregator.1} parent=5 // pred_region
        %s328 = ssub.s32 %s17, 1
        // Predicated region
        $region49: #{skip_sc_aggregator.1} parent=47 // pred_check
          %p329 = pneg %p50
        $region50: #{skip_sc_aggregator.1} parent=47 // pred_check_branch
          %331 = sbr.rel (%p329) target = $region52
        $region51: #{skip_sc_aggregator.1} parent=47 // pred_region
          %332 = dma.done [#allocation4], 16
        $region52: #{skip_sc_aggregator.1} parent=47 // pred_fallthru
          _
        %333 = sfence
        %p334 = pneg %p50
        %p335 = pneg %p47
        %p336 = scmp.lt.s32.totalorder %s27, 0
        %s337 = scalar_select %p336, %s27, 0
        %s338 = smul.u32 2, %s337
        %p339 = scmp.lt.s32.totalorder %s26, 1
        %s340 = scalar_select %p339, %s26, 1
        %p341 = scmp.lt.s32.totalorder %s338, 1
        %s342 = scalar_select %p341, %s338, 1
        %s343 = smul.addr %s340, 2
        %s344 = sadd.s32 %s342, %s343
        %s345 = smul.addr %s344, 4
        %s346 = scalar_lea.vmem %s1, %s345
        %p347 = pneg %p82
        %p348 = pneg %p79
        %p349 = pneg %p103
        %p350 = pneg %p100
        %p351 = scmp.lt.s32.totalorder %s27, 0
        %s352 = scalar_select %p351, %s27, 0
        %p353 = scmp.lt.s32.totalorder %s26, 1
        %s354 = scalar_select %p353, %s26, 1
        %p355 = scmp.lt.s32.totalorder %s352, 0
        %s356 = scalar_select %p355, %s352, 0
        %s357 = sadd.s32 %s356, %s354
        %s358 = smul.addr %s357, 8
        %s359 = scalar_lea.vmem %s3, %s358
        %p360 = pneg %p135
        %p361 = pneg %p132
        %p362 = pneg %p156
        %p363 = pneg %p153
        %p364 = scmp.lt.s32.totalorder %s27, 0
        %s365 = scalar_select %p364, %s27, 0
        %s366 = smul.u32 2, %s365
        %p367 = scmp.lt.s32.totalorder %s26, 1
        %s368 = scalar_select %p367, %s26, 1
        %p369 = scmp.lt.s32.totalorder %s366, 1
        %s370 = scalar_select %p369, %s366, 1
        %s371 = smul.addr %s368, 12
        %s372 = sadd.s32 %s370, %s371
        %s373 = smul.addr %s372, 8
        %s374 = scalar_lea.vmem %s5, %s373
        %p375 = pneg %p188
        %p376 = pneg %p185
        %p377 = pneg %p209
        %p378 = pneg %p206
        %p379 = pneg %p235
        %p380 = pneg %p232
        %s381 = sand.u32 %s222, 1
        %s382 = scalar_lea.sflag [#allocation3], %s381
        %s383 = sand.u32 %s222, 1
        %s384 = smul.addr %s383, 32
        %s385 = scalar_lea.vmem [#allocation5], %s384
        %p386 = scmp.lt.s32.totalorder %s27, 0
        %s387 = scalar_select %p386, %s27, 0
        %s388 = smul.u32 2, %s387
        %p389 = scmp.lt.s32.totalorder %s26, 1
        %s390 = scalar_select %p389, %s26, 1
        %p391 = scmp.lt.s32.totalorder %s388, 1
        %s392 = scalar_select %p391, %s388, 1
        %s393 = smul.addr %s390, 2
        %s394 = sadd.s32 %s392, %s393
        %s395 = smul.addr %s394, 4
        %s396 = scalar_lea.vmem %s1, %s395
        %p397 = scmp.lt.s32.totalorder %s27, 0
        %s398 = scalar_select %p397, %s27, 0
        %s399 = smul.u32 2, %s398
        %p400 = scmp.lt.s32.totalorder %s27, 0
        %s401 = scalar_select %p400, %s27, 0
        %p402 = scmp.lt.s32.totalorder %s26, 1
        %s403 = scalar_select %p402, %s26, 1
        %p404 = scmp.lt.s32.totalorder %s401, 0
        %s405 = scalar_select %p404, %s401, 0
        %s406 = sadd.s32 %s405, %s403
        %s407 = smul.addr %s406, 8
        %s408 = scalar_lea.vmem %s3, %s407
        %p409 = scmp.lt.s32.totalorder %s27, 0
        %s410 = scalar_select %p409, %s27, 0
        %p411 = scmp.lt.s32.totalorder %s27, 0
        %s412 = scalar_select %p411, %s27, 0
        %s413 = smul.u32 2, %s412
        %p414 = scmp.lt.s32.totalorder %s26, 1
        %s415 = scalar_select %p414, %s26, 1
        %p416 = scmp.lt.s32.totalorder %s413, 1
        %s417 = scalar_select %p416, %s413, 1
        %s418 = smul.addr %s415, 12
        %s419 = sadd.s32 %s417, %s418
        %s420 = smul.addr %s419, 8
        %s421 = scalar_lea.vmem %s5, %s420
        %p422 = scmp.lt.s32.totalorder %s27, 0
        %s423 = scalar_select %p422, %s27, 0
        %s424 = smul.u32 2, %s423
        %p425 = scmp.eq.s32.totalorder %s27, 0
        // Predicated region
        $region53: #{skip_sc_aggregator.1} parent=47 // pred_check
          %p426 = pneg %p425
        $region54: #{skip_sc_aggregator.1} parent=47 // pred_check_branch
          %428 = sbr.rel (%p426) target = $region56
        $region55: #{skip_sc_aggregator.1} parent=47 // pred_region
          %vm429 = vcmask 261120
          %430 = vst.msk [vmem:[%s385] sm:$0xff] %vm429, 0.0
          %431 = vst.msk [vmem:[%s385 + $0x8] sm:$0xff] %vm429, 0.0
          %432 = vst.msk [vmem:[%s385 + $0x10] sm:$0xff] %vm429, 0.0
          %433 = vst.msk [vmem:[%s385 + $0x18] sm:$0xff] %vm429, 0.0
          %v434 = vld [vmem:[%s2] sm:$0xff]
          %v435 = vld [vmem:[%s2 + $0x8] sm:$0xff]
          %v436 = vld [vmem:[%s2 + $0x10] sm:$0xff]
          %v437 = vld [vmem:[%s2 + $0x18] sm:$0xff]
          %v438 = vld [vmem:[%s396] sm:$0xff]
          %v440 = vcombine.high %v438, %v438
          %442 = vmatprep.subr.mxu0 %v440
          %443 = vmatpush1.xpose.msra.mxu0 %v438
          %444 = vmatprep.subr.mxu0 0.0
          %445 = vmatpush1.xpose.msra.mxu0 0.0
          %446 = vmatprep.subr.mxu0 0.0
          %447 = vmatpush1.xpose.msra.mxu0 0.0
          %448 = vmatprep.subr.mxu0 0.0
          %449 = vmatpush1.xpose.msra.mxu0 0.0
          %450 = vmatprep.subr.mxu0 0.0
          %451 = vmatpush1.xpose.msra.mxu0 0.0
          %452 = vmatprep.subr.mxu0 0.0
          %453 = vmatpush1.xpose.msra.mxu0 0.0
          %454 = vmatprep.subr.mxu0 0.0
          %455 = vmatpush1.xpose.msra.mxu0 0.0
          %456 = vmatprep.subr.mxu0 0.0
          %457 = vmatpush1.xpose.msra.mxu0 0.0
          %458 = vmatprep.subr.mxu0 0.0
          %459 = vmatpush1.xpose.msra.mxu0 0.0
          %460 = vmatprep.subr.mxu0 0.0
          %461 = vmatpush1.xpose.msra.mxu0 0.0
          %462 = vmatprep.subr.mxu0 0.0
          %463 = vmatpush1.xpose.msra.mxu0 0.0
          %464 = vmatprep.subr.mxu0 0.0
          %465 = vmatpush1.xpose.msra.mxu0 0.0
          %466 = vmatprep.subr.mxu0 0.0
          %467 = vmatpush1.xpose.msra.mxu0 0.0
          %468 = vmatprep.subr.mxu0 0.0
          %469 = vmatpush1.xpose.msra.mxu0 0.0
          %470 = vmatprep.subr.mxu0 0.0
          %471 = vmatpush1.xpose.msra.mxu0 0.0
          %472 = vmatprep.subr.mxu0 0.0
          %473 = vmatpush1.xpose.msra.mxu0 0.0
          %474 = vmatprep.subr.mxu0 0.0
          %475 = vmatpush1.xpose.msra.mxu0 0.0
          %476 = vmatprep.subr.mxu0 0.0
          %477 = vmatpush1.xpose.msra.mxu0 0.0
          %478 = vmatprep.subr.mxu0 0.0
          %479 = vmatpush1.xpose.msra.mxu0 0.0
          %480 = vmatprep.subr.mxu0 0.0
          %481 = vmatpush1.xpose.msra.mxu0 0.0
          %482 = vmatprep.subr.mxu0 0.0
          %483 = vmatpush1.xpose.msra.mxu0 0.0
          %484 = vmatprep.subr.mxu0 0.0
          %485 = vmatpush1.xpose.msra.mxu0 0.0
          %486 = vmatprep.subr.mxu0 0.0
          %487 = vmatpush1.xpose.msra.mxu0 0.0
          %488 = vmatprep.subr.mxu0 0.0
          %489 = vmatpush1.xpose.msra.mxu0 0.0
          %490 = vmatprep.subr.mxu0 0.0
          %491 = vmatpush1.xpose.msra.mxu0 0.0
          %492 = vmatprep.subr.mxu0 0.0
          %493 = vmatpush1.xpose.msra.mxu0 0.0
          %494 = vmatprep.subr.mxu0 0.0
          %495 = vmatpush1.xpose.msra.mxu0 0.0
          %496 = vmatprep.subr.mxu0 0.0
          %497 = vmatpush1.xpose.msra.mxu0 0.0
          %498 = vmatprep.subr.mxu0 0.0
          %499 = vmatpush1.xpose.msra.mxu0 0.0
          %500 = vmatprep.subr.mxu0 0.0
          %501 = vmatpush1.xpose.msra.mxu0 0.0
          %502 = vmatprep.subr.mxu0 0.0
          %503 = vmatpush1.xpose.msra.mxu0 0.0
          %504 = vmatprep.subr.mxu0 0.0
          %505 = vmatpush1.xpose.msra.mxu0 0.0
          %506 = vmatprep.mubr.f32.mxu0 %v440
          %507 = vmatmul.mubr.f32.gmra.mrb[0].mxu0 %v438
          %v508 = vpop.f32.mrb[0].mxu0
          %v509 = vadd.f32 0.0, %v508
          %v510 = vpop.f32.mrb[0].mxu0
          %511 = vdwg.mxu0
          %vm512 = vcmask 31744
          %v514 = vsel %vm512, %v434, 0
          %v517 = vsel %vm512, %v435, 0
          %v520 = vsel %vm512, %v436, 0
          %v523 = vsel %vm512, %v437, 0
          %vm525 = vcmask 1043456
          %v527 = vsel %vm525, %v509, 0
          %529 = vmatprep.subr.mxu0 0.0
          %530 = vmatpush1.msra.mxu0 %v527
          %531 = vmatprep.subr.mxu0 0.0
          %532 = vmatpush1.msra.mxu0 0.0
          %533 = vmatprep.subr.mxu0 0.0
          %534 = vmatpush1.msra.mxu0 0.0
          %535 = vmatprep.subr.mxu0 0.0
          %536 = vmatpush1.msra.mxu0 0.0
          %537 = vmatprep.subr.mxu0 0.0
          %538 = vmatpush1.msra.mxu0 0.0
          %539 = vmatprep.subr.mxu0 0.0
          %540 = vmatpush1.msra.mxu0 0.0
          %541 = vmatprep.subr.mxu0 0.0
          %542 = vmatpush1.msra.mxu0 0.0
          %543 = vmatprep.subr.mxu0 0.0
          %544 = vmatpush1.msra.mxu0 0.0
          %545 = vmatprep.subr.mxu0 0.0
          %546 = vmatpush1.msra.mxu0 0.0
          %547 = vmatprep.subr.mxu0 0.0
          %548 = vmatpush1.msra.mxu0 0.0
          %549 = vmatprep.subr.mxu0 0.0
          %550 = vmatpush1.msra.mxu0 0.0
          %551 = vmatprep.subr.mxu0 0.0
          %552 = vmatpush1.msra.mxu0 0.0
          %553 = vmatprep.subr.mxu0 0.0
          %554 = vmatpush1.msra.mxu0 0.0
          %555 = vmatprep.subr.mxu0 0.0
          %556 = vmatpush1.msra.mxu0 0.0
          %557 = vmatprep.subr.mxu0 0.0
          %558 = vmatpush1.msra.mxu0 0.0
          %559 = vmatprep.subr.mxu0 0.0
          %560 = vmatpush1.msra.mxu0 0.0
          %561 = vmatprep.subr.mxu0 0.0
          %562 = vmatpush1.msra.mxu0 0.0
          %563 = vmatprep.subr.mxu0 0.0
          %564 = vmatpush1.msra.mxu0 0.0
          %565 = vmatprep.subr.mxu0 0.0
          %566 = vmatpush1.msra.mxu0 0.0
          %567 = vmatprep.subr.mxu0 0.0
          %568 = vmatpush1.msra.mxu0 0.0
          %569 = vmatprep.subr.mxu0 0.0
          %570 = vmatpush1.msra.mxu0 0.0
          %571 = vmatprep.subr.mxu0 0.0
          %572 = vmatpush1.msra.mxu0 0.0
          %573 = vmatprep.subr.mxu0 0.0
          %574 = vmatpush1.msra.mxu0 0.0
          %575 = vmatprep.subr.mxu0 0.0
          %576 = vmatpush1.msra.mxu0 0.0
          %577 = vmatprep.subr.mxu0 0.0
          %578 = vmatpush1.msra.mxu0 0.0
          %579 = vmatprep.subr.mxu0 0.0
          %580 = vmatpush1.msra.mxu0 0.0
          %581 = vmatprep.subr.mxu0 0.0
          %582 = vmatpush1.msra.mxu0 0.0
          %583 = vmatprep.subr.mxu0 0.0
          %584 = vmatpush1.msra.mxu0 0.0
          %585 = vmatprep.subr.mxu0 0.0
          %586 = vmatpush1.msra.mxu0 0.0
          %587 = vmatprep.subr.mxu0 0.0
          %588 = vmatpush1.msra.mxu0 0.0
          %589 = vmatprep.subr.mxu0 0.0
          %590 = vmatpush1.msra.mxu0 0.0
          %591 = vmatprep.subr.mxu0 0.0
          %592 = vmatpush1.msra.mxu0 0.0
          %593 = vmatprep.mubr.f32.mxu0 0.0
          %594 = vmatmul.mubr.f32.gmra.mrb[0].mxu0 %v514
          %v595 = vpop.f32.mrb[0].mxu0
          %v596 = vadd.f32 0.0, %v595
          %v597 = vpop.f32.mrb[0].mxu0
          %598 = vmatprep.mubr.f32.mxu0 0.0
          %599 = vmatmul.mubr.f32.gmra.mrb[0].mxu0 %v517
          %v600 = vpop.f32.mrb[0].mxu0
          %v601 = vadd.f32 0.0, %v600
          %v602 = vpop.f32.mrb[0].mxu0
          %603 = vmatprep.mubr.f32.mxu0 0.0
          %604 = vmatmul.mubr.f32.gmra.mrb[0].mxu0 %v520
          %v605 = vpop.f32.mrb[0].mxu0
          %v606 = vadd.f32 0.0, %v605
          %v607 = vpop.f32.mrb[0].mxu0
          %608 = vmatprep.mubr.f32.mxu0 0.0
          %609 = vmatmul.mubr.f32.gmra.mrb[0].mxu0 %v523
          %v610 = vpop.f32.mrb[0].mxu0
          %v611 = vadd.f32 0.0, %v610
          %v612 = vpop.f32.mrb[0].mxu0
          %613 = vdwg.mxu0
          %v615 = vsel %vm512, %v596, 0
          %v618 = vsel %vm512, %v601, 0
          %v621 = vsel %vm512, %v606, 0
          %v624 = vsel %vm512, %v611, 0
          %626 = vmatprep.subr.mxu0 0.0
          %627 = vmatpush1.xpose.msra.mxu0 %v514
          %628 = vmatprep.subr.mxu0 0.0
          %629 = vmatpush1.xpose.msra.mxu0 %v517
          %630 = vmatprep.subr.mxu0 0.0
          %631 = vmatpush1.xpose.msra.mxu0 %v520
          %632 = vmatprep.subr.mxu0 0.0
          %633 = vmatpush1.xpose.msra.mxu0 %v523
          %634 = vmatprep.subr.mxu0 0.0
          %635 = vmatpush1.xpose.msra.mxu0 0.0
          %636 = vmatprep.subr.mxu0 0.0
          %637 = vmatpush1.xpose.msra.mxu0 0.0
          %638 = vmatprep.subr.mxu0 0.0
          %639 = vmatpush1.xpose.msra.mxu0 0.0
          %640 = vmatprep.subr.mxu0 0.0
          %641 = vmatpush1.xpose.msra.mxu0 0.0
          %642 = vmatprep.subr.mxu0 0.0
          %643 = vmatpush1.xpose.msra.mxu0 0.0
          %644 = vmatprep.subr.mxu0 0.0
          %645 = vmatpush1.xpose.msra.mxu0 0.0
          %646 = vmatprep.subr.mxu0 0.0
          %647 = vmatpush1.xpose.msra.mxu0 0.0
          %648 = vmatprep.subr.mxu0 0.0
          %649 = vmatpush1.xpose.msra.mxu0 0.0
          %650 = vmatprep.subr.mxu0 0.0
          %651 = vmatpush1.xpose.msra.mxu0 0.0
          %652 = vmatprep.subr.mxu0 0.0
          %653 = vmatpush1.xpose.msra.mxu0 0.0
          %654 = vmatprep.subr.mxu0 0.0
          %655 = vmatpush1.xpose.msra.mxu0 0.0
          %656 = vmatprep.subr.mxu0 0.0
          %657 = vmatpush1.xpose.msra.mxu0 0.0
          %658 = vmatprep.subr.mxu0 0.0
          %659 = vmatpush1.xpose.msra.mxu0 0.0
          %660 = vmatprep.subr.mxu0 0.0
          %661 = vmatpush1.xpose.msra.mxu0 0.0
          %662 = vmatprep.subr.mxu0 0.0
          %663 = vmatpush1.xpose.msra.mxu0 0.0
          %664 = vmatprep.subr.mxu0 0.0
          %665 = vmatpush1.xpose.msra.mxu0 0.0
          %666 = vmatprep.subr.mxu0 0.0
          %667 = vmatpush1.xpose.msra.mxu0 0.0
          %668 = vmatprep.subr.mxu0 0.0
          %669 = vmatpush1.xpose.msra.mxu0 0.0
          %670 = vmatprep.subr.mxu0 0.0
          %671 = vmatpush1.xpose.msra.mxu0 0.0
          %672 = vmatprep.subr.mxu0 0.0
          %673 = vmatpush1.xpose.msra.mxu0 0.0
          %674 = vmatprep.subr.mxu0 0.0
          %675 = vmatpush1.xpose.msra.mxu0 0.0
          %676 = vmatprep.subr.mxu0 0.0
          %677 = vmatpush1.xpose.msra.mxu0 0.0
          %678 = vmatprep.subr.mxu0 0.0
          %679 = vmatpush1.xpose.msra.mxu0 0.0
          %680 = vmatprep.subr.mxu0 0.0
          %681 = vmatpush1.xpose.msra.mxu0 0.0
          %682 = vmatprep.subr.mxu0 0.0
          %683 = vmatpush1.xpose.msra.mxu0 0.0
          %684 = vmatprep.subr.mxu0 0.0
          %685 = vmatpush1.xpose.msra.mxu0 0.0
          %686 = vmatprep.subr.mxu0 0.0
          %687 = vmatpush1.xpose.msra.mxu0 0.0
          %688 = vmatprep.subr.mxu0 0.0
          %689 = vmatpush1.xpose.msra.mxu0 0.0
          %690 = vmatprep.mubr.f32.mxu0 0.0
          %691 = vmatmul.mubr.f32.gmra.mrb[0].mxu0 %v615
          %v692 = vpop.f32.mrb[0].mxu0
          %v693 = vadd.f32 0.0, %v692
          %v694 = vpop.f32.mrb[0].mxu0
          %695 = vmatprep.mubr.f32.mxu0 0.0
          %696 = vmatmul.mubr.f32.gmra.mrb[0].mxu0 %v618
          %v697 = vpop.f32.mrb[0].mxu0
          %v698 = vadd.f32 0.0, %v697
          %v699 = vpop.f32.mrb[0].mxu0
          %700 = vmatprep.mubr.f32.mxu0 0.0
          %701 = vmatmul.mubr.f32.gmra.mrb[0].mxu0 %v621
          %v702 = vpop.f32.mrb[0].mxu0
          %v703 = vadd.f32 0.0, %v702
          %v704 = vpop.f32.mrb[0].mxu0
          %705 = vmatprep.mubr.f32.mxu0 0.0
          %706 = vmatmul.mubr.f32.gmra.mrb[0].mxu0 %v624
          %v707 = vpop.f32.mrb[0].mxu0
          %v708 = vadd.f32 0.0, %v707
          %v709 = vpop.f32.mrb[0].mxu0
          %710 = vdwg.mxu0
          %v711 = vlaneseq
          %v712 = vshrl.u32 %v711, 7
          %v713 = vadd.s32 %v712, 8
          %v714 = vadd.s32 %v712, 16
          %v715 = vadd.s32 %v712, 24
          %v716 = vlaneseq
          %v717 = vand.u32 %v716, 127
          %vm718 = vcmp.eq.s32.totalorder %v712, %v717
          %vm719 = vcmp.eq.s32.totalorder %v713, %v717
          %vm720 = vcmp.eq.s32.totalorder %v714, %v717
          %vm721 = vcmp.eq.s32.totalorder %v715, %v717
          %v722 = vsel %vm718, %v693, 0.0
          %v723 = vsel %vm719, %v698, 0.0
          %v724 = vsel %vm720, %v703, 0.0
          %v725 = vsel %vm721, %v708, 0.0
          %v726 = vsel %vm429, %v722, 0.0
          %727 = vadd.xlane.f32.xlu0 %v726
          %v728 = vpop.xlane.xlu0 %727
          %v729 = vsel %vm429, %v723, 0.0
          %730 = vadd.xlane.f32.xlu0 %v729
          %v731 = vpop.xlane.xlu0 %730
          %v732 = vsel %vm429, %v724, 0.0
          %733 = vadd.xlane.f32.xlu0 %v732
          %v734 = vpop.xlane.xlu0 %733
          %v735 = vsel %vm429, %v725, 0.0
          %736 = vadd.xlane.f32.xlu0 %v735
          %v737 = vpop.xlane.xlu0 %736
          %v738 = vadd.f32 %v726, %v729
          %v739 = vadd.f32 %v738, %v732
          %v740 = vadd.f32 %v739, %v735
          %v741 = vrot.slane %v740, 4
          %v742 = vadd.f32 %v740, %v741
          %v743 = vrot.slane %v742, 2
          %v744 = vadd.f32 %v742, %v743
          %v745 = vrot.slane %v744, 1
          %v746 = vadd.f32 %v744, %v745
          %v747 = vrsqrt.pop %v728
          %v748 = vrsqrt.pop %v731
          %v749 = vrsqrt.pop %v734
          %v750 = vrsqrt.pop %v737
          %v751 = vmin.f32 %v747, 1e+12
          %v752 = vmin.f32 %v748, 1e+12
          %v753 = vmin.f32 %v749, 1e+12
          %v754 = vmin.f32 %v750, 1e+12
          %v755 = vrsqrt.pop %v746
          %v756 = vmin.f32 %v755, 1e+12
          %v757 = vmul.f32 %v693, %v751
          %v758 = vmul.f32 %v698, %v752
          %v759 = vmul.f32 %v703, %v753
          %v760 = vmul.f32 %v708, %v754
          %v761 = vmul.f32 %v757, %v756
          %v762 = vmul.f32 %v758, %v756
          %v763 = vmul.f32 %v759, %v756
          %v764 = vmul.f32 %v760, %v756
          %v765 = vld [vmem:[%s385] sm:$0xff]
          %v766 = vld [vmem:[%s385 + $0x8] sm:$0xff]
          %v767 = vld [vmem:[%s385 + $0x10] sm:$0xff]
          %v768 = vld [vmem:[%s385 + $0x18] sm:$0xff]
          %s769 = sld [smem:[#allocation2]]
          %v770 = vstv %s769
          %v771 = vmul.f32 %v770, %v761
          %v772 = vmul.f32 %v770, %v762
          %v773 = vmul.f32 %v770, %v763
          %v774 = vmul.f32 %v770, %v764
          %v775 = vadd.f32 %v765, %v771
          %v776 = vadd.f32 %v766, %v772
          %v777 = vadd.f32 %v767, %v773
          %v778 = vadd.f32 %v768, %v774
          %779 = vst.msk [vmem:[%s385] sm:$0xff] %vm429, %v775
          %780 = vst.msk [vmem:[%s385 + $0x8] sm:$0xff] %vm429, %v776
          %781 = vst.msk [vmem:[%s385 + $0x10] sm:$0xff] %vm429, %v777
          %782 = vst.msk [vmem:[%s385 + $0x18] sm:$0xff] %vm429, %v778
          %v783 = vld [vmem:[%s4] sm:$0xff]
          %v784 = vld [vmem:[%s4 + $0x8] sm:$0xff]
          %v785 = vld [vmem:[%s4 + $0x10] sm:$0xff]
          %v786 = vld [vmem:[%s4 + $0x18] sm:$0xff]
          %v787 = vld [vmem:[%s408] sm:$0xff]
          %vm788 = vcmask 523264
          %v790 = vsel %vm788, %v787, 0
          %792 = vmatprep.subr.mxu0 0.0
          %793 = vmatpush1.xpose.msra.mxu0 %v790
          %794 = vmatprep.subr.mxu0 0.0
          %795 = vmatpush1.xpose.msra.mxu0 0.0
          %796 = vmatprep.subr.mxu0 0.0
          %797 = vmatpush1.xpose.msra.mxu0 0.0
          %798 = vmatprep.subr.mxu0 0.0
          %799 = vmatpush1.xpose.msra.mxu0 0.0
          %800 = vmatprep.subr.mxu0 0.0
          %801 = vmatpush1.xpose.msra.mxu0 0.0
          %802 = vmatprep.subr.mxu0 0.0
          %803 = vmatpush1.xpose.msra.mxu0 0.0
          %804 = vmatprep.subr.mxu0 0.0
          %805 = vmatpush1.xpose.msra.mxu0 0.0
          %806 = vmatprep.subr.mxu0 0.0
          %807 = vmatpush1.xpose.msra.mxu0 0.0
          %808 = vmatprep.subr.mxu0 0.0
          %809 = vmatpush1.xpose.msra.mxu0 0.0
          %810 = vmatprep.subr.mxu0 0.0
          %811 = vmatpush1.xpose.msra.mxu0 0.0
          %812 = vmatprep.subr.mxu0 0.0
          %813 = vmatpush1.xpose.msra.mxu0 0.0
          %814 = vmatprep.subr.mxu0 0.0
          %815 = vmatpush1.xpose.msra.mxu0 0.0
          %816 = vmatprep.subr.mxu0 0.0
          %817 = vmatpush1.xpose.msra.mxu0 0.0
          %818 = vmatprep.subr.mxu0 0.0
          %819 = vmatpush1.xpose.msra.mxu0 0.0
          %820 = vmatprep.subr.mxu0 0.0
          %821 = vmatpush1.xpose.msra.mxu0 0.0
          %822 = vmatprep.subr.mxu0 0.0
          %823 = vmatpush1.xpose.msra.mxu0 0.0
          %824 = vmatprep.subr.mxu0 0.0
          %825 = vmatpush1.xpose.msra.mxu0 0.0
          %826 = vmatprep.subr.mxu0 0.0
          %827 = vmatpush1.xpose.msra.mxu0 0.0
          %828 = vmatprep.subr.mxu0 0.0
          %829 = vmatpush1.xpose.msra.mxu0 0.0
          %830 = vmatprep.subr.mxu0 0.0
          %831 = vmatpush1.xpose.msra.mxu0 0.0
          %832 = vmatprep.subr.mxu0 0.0
          %833 = vmatpush1.xpose.msra.mxu0 0.0
          %834 = vmatprep.subr.mxu0 0.0
          %835 = vmatpush1.xpose.msra.mxu0 0.0
          %836 = vmatprep.subr.mxu0 0.0
          %837 = vmatpush1.xpose.msra.mxu0 0.0
          %838 = vmatprep.subr.mxu0 0.0
          %839 = vmatpush1.xpose.msra.mxu0 0.0
          %840 = vmatprep.subr.mxu0 0.0
          %841 = vmatpush1.xpose.msra.mxu0 0.0
          %842 = vmatprep.subr.mxu0 0.0
          %843 = vmatpush1.xpose.msra.mxu0 0.0
          %844 = vmatprep.subr.mxu0 0.0
          %845 = vmatpush1.xpose.msra.mxu0 0.0
          %846 = vmatprep.subr.mxu0 0.0
          %847 = vmatpush1.xpose.msra.mxu0 0.0
          %848 = vmatprep.subr.mxu0 0.0
          %849 = vmatpush1.xpose.msra.mxu0 0.0
          %850 = vmatprep.subr.mxu0 0.0
          %851 = vmatpush1.xpose.msra.mxu0 0.0
          %852 = vmatprep.subr.mxu0 0.0
          %853 = vmatpush1.xpose.msra.mxu0 0.0
          %854 = vmatprep.subr.mxu0 0.0
          %855 = vmatpush1.xpose.msra.mxu0 0.0
          %856 = vmatprep.mubr.f32.mxu0 0.0
          %857 = vmatmul.mubr.f32.gmra.mrb[0].mxu0 %v790
          %v858 = vpop.f32.mrb[0].mxu0
          %v859 = vadd.f32 0.0, %v858
          %v860 = vpop.f32.mrb[0].mxu0
          %861 = vdwg.mxu0
          %vm862 = vcmask 64512
          %v864 = vsel %vm862, %v783, 0
          %v867 = vsel %vm862, %v784, 0
          %v870 = vsel %vm862, %v785, 0
          %v873 = vsel %vm862, %v786, 0
          %875 = vmatprep.subr.mxu0 0.0
          %876 = vmatpush1.msra.mxu0 %v859
          %877 = vmatprep.subr.mxu0 0.0
          %878 = vmatpush1.msra.mxu0 0.0
          %879 = vmatprep.subr.mxu0 0.0
          %880 = vmatpush1.msra.mxu0 0.0
          %881 = vmatprep.subr.mxu0 0.0
          %882 = vmatpush1.msra.mxu0 0.0
          %883 = vmatprep.subr.mxu0 0.0
          %884 = vmatpush1.msra.mxu0 0.0
          %885 = vmatprep.subr.mxu0 0.0
          %886 = vmatpush1.msra.mxu0 0.0
          %887 = vmatprep.subr.mxu0 0.0
          %888 = vmatpush1.msra.mxu0 0.0
          %889 = vmatprep.subr.mxu0 0.0
          %890 = vmatpush1.msra.mxu0 0.0
          %891 = vmatprep.subr.mxu0 0.0
          %892 = vmatpush1.msra.mxu0 0.0
          %893 = vmatprep.subr.mxu0 0.0
          %894 = vmatpush1.msra.mxu0 0.0
          %895 = vmatprep.subr.mxu0 0.0
          %896 = vmatpush1.msra.mxu0 0.0
          %897 = vmatprep.subr.mxu0 0.0
          %898 = vmatpush1.msra.mxu0 0.0
          %899 = vmatprep.subr.mxu0 0.0
          %900 = vmatpush1.msra.mxu0 0.0
          %901 = vmatprep.subr.mxu0 0.0
          %902 = vmatpush1.msra.mxu0 0.0
          %903 = vmatprep.subr.mxu0 0.0
          %904 = vmatpush1.msra.mxu0 0.0
          %905 = vmatprep.subr.mxu0 0.0
          %906 = vmatpush1.msra.mxu0 0.0
          %907 = vmatprep.subr.mxu0 0.0
          %908 = vmatpush1.msra.mxu0 0.0
          %909 = vmatprep.subr.mxu0 0.0
          %910 = vmatpush1.msra.mxu0 0.0
          %911 = vmatprep.subr.mxu0 0.0
          %912 = vmatpush1.msra.mxu0 0.0
          %913 = vmatprep.subr.mxu0 0.0
          %914 = vmatpush1.msra.mxu0 0.0
          %915 = vmatprep.subr.mxu0 0.0
          %916 = vmatpush1.msra.mxu0 0.0
          %917 = vmatprep.subr.mxu0 0.0
          %918 = vmatpush1.msra.mxu0 0.0
          %919 = vmatprep.subr.mxu0 0.0
          %920 = vmatpush1.msra.mxu0 0.0
          %921 = vmatprep.subr.mxu0 0.0
          %922 = vmatpush1.msra.mxu0 0.0
          %923 = vmatprep.subr.mxu0 0.0
          %924 = vmatpush1.msra.mxu0 0.0
          %925 = vmatprep.subr.mxu0 0.0
          %926 = vmatpush1.msra.mxu0 0.0
          %927 = vmatprep.subr.mxu0 0.0
          %928 = vmatpush1.msra.mxu0 0.0
          %929 = vmatprep.subr.mxu0 0.0
          %930 = vmatpush1.msra.mxu0 0.0
          %931 = vmatprep.subr.mxu0 0.0
          %932 = vmatpush1.msra.mxu0 0.0
          %933 = vmatprep.subr.mxu0 0.0
          %934 = vmatpush1.msra.mxu0 0.0
          %935 = vmatprep.subr.mxu0 0.0
          %936 = vmatpush1.msra.mxu0 0.0
          %937 = vmatprep.subr.mxu0 0.0
          %938 = vmatpush1.msra.mxu0 0.0
          %939 = vmatprep.mubr.f32.mxu0 0.0
          %940 = vmatmul.mubr.f32.gmra.mrb[0].mxu0 %v864
          %v941 = vpop.f32.mrb[0].mxu0
          %v942 = vadd.f32 0.0, %v941
          %v943 = vpop.f32.mrb[0].mxu0
          %944 = vmatprep.mubr.f32.mxu0 0.0
          %945 = vmatmul.mubr.f32.gmra.mrb[0].mxu0 %v867
          %v946 = vpop.f32.mrb[0].mxu0
          %v947 = vadd.f32 0.0, %v946
          %v948 = vpop.f32.mrb[0].mxu0
          %949 = vmatprep.mubr.f32.mxu0 0.0
          %950 = vmatmul.mubr.f32.gmra.mrb[0].mxu0 %v870
          %v951 = vpop.f32.mrb[0].mxu0
          %v952 = vadd.f32 0.0, %v951
          %v953 = vpop.f32.mrb[0].mxu0
          %954 = vmatprep.mubr.f32.mxu0 0.0
          %955 = vmatmul.mubr.f32.gmra.mrb[0].mxu0 %v873
          %v956 = vpop.f32.mrb[0].mxu0
          %v957 = vadd.f32 0.0, %v956
          %v958 = vpop.f32.mrb[0].mxu0
          %959 = vdwg.mxu0
          %v961 = vsel %vm862, %v942, 0
          %v964 = vsel %vm862, %v947, 0
          %v967 = vsel %vm862, %v952, 0
          %v970 = vsel %vm862, %v957, 0
          %972 = vmatprep.subr.mxu0 0.0
          %973 = vmatpush1.xpose.msra.mxu0 %v864
          %974 = vmatprep.subr.mxu0 0.0
          %975 = vmatpush1.xpose.msra.mxu0 %v867
          %976 = vmatprep.subr.mxu0 0.0
          %977 = vmatpush1.xpose.msra.mxu0 %v870
          %978 = vmatprep.subr.mxu0 0.0
          %979 = vmatpush1.xpose.msra.mxu0 %v873
          %980 = vmatprep.subr.mxu0 0.0
          %981 = vmatpush1.xpose.msra.mxu0 0.0
          %982 = vmatprep.subr.mxu0 0.0
          %983 = vmatpush1.xpose.msra.mxu0 0.0
          %984 = vmatprep.subr.mxu0 0.0
          %985 = vmatpush1.xpose.msra.mxu0 0.0
          %986 = vmatprep.subr.mxu0 0.0
          %987 = vmatpush1.xpose.msra.mxu0 0.0
          %988 = vmatprep.subr.mxu0 0.0
          %989 = vmatpush1.xpose.msra.mxu0 0.0
          %990 = vmatprep.subr.mxu0 0.0
          %991 = vmatpush1.xpose.msra.mxu0 0.0
          %992 = vmatprep.subr.mxu0 0.0
          %993 = vmatpush1.xpose.msra.mxu0 0.0
          %994 = vmatprep.subr.mxu0 0.0
          %995 = vmatpush1.xpose.msra.mxu0 0.0
          %996 = vmatprep.subr.mxu0 0.0
          %997 = vmatpush1.xpose.msra.mxu0 0.0
          %998 = vmatprep.subr.mxu0 0.0
          %999 = vmatpush1.xpose.msra.mxu0 0.0
          %1000 = vmatprep.subr.mxu0 0.0
          %1001 = vmatpush1.xpose.msra.mxu0 0.0
          %1002 = vmatprep.subr.mxu0 0.0
          %1003 = vmatpush1.xpose.msra.mxu0 0.0
          %1004 = vmatprep.subr.mxu0 0.0
          %1005 = vmatpush1.xpose.msra.mxu0 0.0
          %1006 = vmatprep.subr.mxu0 0.0
          %1007 = vmatpush1.xpose.msra.mxu0 0.0
          %1008 = vmatprep.subr.mxu0 0.0
          %1009 = vmatpush1.xpose.msra.mxu0 0.0
          %1010 = vmatprep.subr.mxu0 0.0
          %1011 = vmatpush1.xpose.msra.mxu0 0.0
          %1012 = vmatprep.subr.mxu0 0.0
          %1013 = vmatpush1.xpose.msra.mxu0 0.0
          %1014 = vmatprep.subr.mxu0 0.0
          %1015 = vmatpush1.xpose.msra.mxu0 0.0
          %1016 = vmatprep.subr.mxu0 0.0
          %1017 = vmatpush1.xpose.msra.mxu0 0.0
          %1018 = vmatprep.subr.mxu0 0.0
          %1019 = vmatpush1.xpose.msra.mxu0 0.0
          %1020 = vmatprep.subr.mxu0 0.0
          %1021 = vmatpush1.xpose.msra.mxu0 0.0
          %1022 = vmatprep.subr.mxu0 0.0
          %1023 = vmatpush1.xpose.msra.mxu0 0.0
          %1024 = vmatprep.subr.mxu0 0.0
          %1025 = vmatpush1.xpose.msra.mxu0 0.0
          %1026 = vmatprep.subr.mxu0 0.0
          %1027 = vmatpush1.xpose.msra.mxu0 0.0
          %1028 = vmatprep.subr.mxu0 0.0
          %1029 = vmatpush1.xpose.msra.mxu0 0.0
          %1030 = vmatprep.subr.mxu0 0.0
          %1031 = vmatpush1.xpose.msra.mxu0 0.0
          %1032 = vmatprep.subr.mxu0 0.0
          %1033 = vmatpush1.xpose.msra.mxu0 0.0
          %1034 = vmatprep.subr.mxu0 0.0
          %1035 = vmatpush1.xpose.msra.mxu0 0.0
          %1036 = vmatprep.mubr.f32.mxu0 0.0
          %1037 = vmatmul.mubr.f32.gmra.mrb[0].mxu0 %v961
          %v1038 = vpop.f32.mrb[0].mxu0
          %v1039 = vadd.f32 0.0, %v1038
          %v1040 = vpop.f32.mrb[0].mxu0
          %1041 = vmatprep.mubr.f32.mxu0 0.0
          %1042 = vmatmul.mubr.f32.gmra.mrb[0].mxu0 %v964
          %v1043 = vpop.f32.mrb[0].mxu0
          %v1044 = vadd.f32 0.0, %v1043
          %v1045 = vpop.f32.mrb[0].mxu0
          %1046 = vmatprep.mubr.f32.mxu0 0.0
          %1047 = vmatmul.mubr.f32.gmra.mrb[0].mxu0 %v967
          %v1048 = vpop.f32.mrb[0].mxu0
          %v1049 = vadd.f32 0.0, %v1048
          %v1050 = vpop.f32.mrb[0].mxu0
          %1051 = vmatprep.mubr.f32.mxu0 0.0
          %1052 = vmatmul.mubr.f32.gmra.mrb[0].mxu0 %v970
          %v1053 = vpop.f32.mrb[0].mxu0
          %v1054 = vadd.f32 0.0, %v1053
          %v1055 = vpop.f32.mrb[0].mxu0
          %1056 = vdwg.mxu0
          %v1057 = vsel %vm718, %v1039, 0.0
          %v1058 = vsel %vm719, %v1044, 0.0
          %v1059 = vsel %vm720, %v1049, 0.0
          %v1060 = vsel %vm721, %v1054, 0.0
          %v1061 = vsel %vm429, %v1057, 0.0
          %1062 = vadd.xlane.f32.xlu0 %v1061
          %v1063 = vpop.xlane.xlu0 %1062
          %v1064 = vsel %vm429, %v1058, 0.0
          %1065 = vadd.xlane.f32.xlu0 %v1064
          %v1066 = vpop.xlane.xlu0 %1065
          %v1067 = vsel %vm429, %v1059, 0.0
          %1068 = vadd.xlane.f32.xlu0 %v1067
          %v1069 = vpop.xlane.xlu0 %1068
          %v1070 = vsel %vm429, %v1060, 0.0
          %1071 = vadd.xlane.f32.xlu0 %v1070
          %v1072 = vpop.xlane.xlu0 %1071
          %v1073 = vadd.f32 %v1061, %v1064
          %v1074 = vadd.f32 %v1073, %v1067
          %v1075 = vadd.f32 %v1074, %v1070
          %v1076 = vrot.slane %v1075, 4
          %v1077 = vadd.f32 %v1075, %v1076
          %v1078 = vrot.slane %v1077, 2
          %v1079 = vadd.f32 %v1077, %v1078
          %v1080 = vrot.slane %v1079, 1
          %v1081 = vadd.f32 %v1079, %v1080
          %v1082 = vrsqrt.pop %v1063
          %v1083 = vrsqrt.pop %v1066
          %v1084 = vrsqrt.pop %v1069
          %v1085 = vrsqrt.pop %v1072
          %v1086 = vmin.f32 %v1082, 1e+12
          %v1087 = vmin.f32 %v1083, 1e+12
          %v1088 = vmin.f32 %v1084, 1e+12
          %v1089 = vmin.f32 %v1085, 1e+12
          %v1090 = vrsqrt.pop %v1081
          %v1091 = vmin.f32 %v1090, 1e+12
          %v1092 = vmul.f32 %v1039, %v1086
          %v1093 = vmul.f32 %v1044, %v1087
          %v1094 = vmul.f32 %v1049, %v1088
          %v1095 = vmul.f32 %v1054, %v1089
          %v1096 = vmul.f32 %v1092, %v1091
          %v1097 = vmul.f32 %v1093, %v1091
          %v1098 = vmul.f32 %v1094, %v1091
          %v1099 = vmul.f32 %v1095, %v1091
          %v1100 = vld [vmem:[%s385] sm:$0xff]
          %v1101 = vld [vmem:[%s385 + $0x8] sm:$0xff]
          %v1102 = vld [vmem:[%s385 + $0x10] sm:$0xff]
          %v1103 = vld [vmem:[%s385 + $0x18] sm:$0xff]
          %s1104 = sld [smem:[#allocation2 + $0x1]]
          %v1105 = vstv %s1104
          %v1106 = vmul.f32 %v1105, %v1096
          %v1107 = vmul.f32 %v1105, %v1097
          %v1108 = vmul.f32 %v1105, %v1098
          %v1109 = vmul.f32 %v1105, %v1099
          %v1110 = vadd.f32 %v1100, %v1106
          %v1111 = vadd.f32 %v1101, %v1107
          %v1112 = vadd.f32 %v1102, %v1108
          %v1113 = vadd.f32 %v1103, %v1109
          %1114 = vst.msk [vmem:[%s385] sm:$0xff] %vm429, %v1110
          %1115 = vst.msk [vmem:[%s385 + $0x8] sm:$0xff] %vm429, %v1111
          %1116 = vst.msk [vmem:[%s385 + $0x10] sm:$0xff] %vm429, %v1112
          %1117 = vst.msk [vmem:[%s385 + $0x18] sm:$0xff] %vm429, %v1113
          %v1118 = vld [vmem:[%s6] sm:$0xff]
          %v1119 = vld [vmem:[%s6 + $0x8] sm:$0xff]
          %v1120 = vld [vmem:[%s6 + $0x10] sm:$0xff]
          %v1121 = vld [vmem:[%s6 + $0x18] sm:$0xff]
          %v1122 = vld [vmem:[%s421] sm:$0xff]
          %v1123 = vld [vmem:[%s421 + $0x8] sm:$0xff]
          %v1124 = vld [vmem:[%s421 + $0x10] sm:$0xff]
          %v1125 = vld [vmem:[%s421 + $0x18] sm:$0xff]
          %v1126 = vld [vmem:[%s421 + $0x20] sm:$0xff]
          %v1127 = vld [vmem:[%s421 + $0x28] sm:$0xff]
          %v1128 = vld [vmem:[%s421 + $0x30] sm:$0xff]
          %v1129 = vld [vmem:[%s421 + $0x38] sm:$0xff]
          %v1130 = vld [vmem:[%s421 + $0x40] sm:$0xff]
          %v1131 = vld [vmem:[%s421 + $0x48] sm:$0xff]
          %v1132 = vld [vmem:[%s421 + $0x50] sm:$0xff]
          %v1133 = vld [vmem:[%s421 + $0x58] sm:$0xff]
          %vm1134 = vcmask 392192
          %v1136 = vsel %vm1134, %v1118, 0
          %v1139 = vsel %vm1134, %v1119, 0
          %v1142 = vsel %vm1134, %v1120, 0
          %v1145 = vsel %vm1134, %v1121, 0
          %1147 = vmatprep.subr.mxu0 %v1123
          %1148 = vmatpush1.msra.mxu0 %v1122
          %1149 = vmatprep.subr.mxu0 %v1125
          %1150 = vmatpush1.msra.mxu0 %v1124
          %1151 = vmatprep.subr.mxu0 %v1127
          %1152 = vmatpush1.msra.mxu0 %v1126
          %1153 = vmatprep.subr.mxu0 %v1129
          %1154 = vmatpush1.msra.mxu0 %v1128
          %1155 = vmatprep.subr.mxu0 %v1131
          %1156 = vmatpush1.msra.mxu0 %v1130
          %1157 = vmatprep.subr.mxu0 %v1133
          %1158 = vmatpush1.msra.mxu0 %v1132
          %1159 = vmatprep.subr.mxu0 0.0
          %1160 = vmatpush1.msra.mxu0 0.0
          %1161 = vmatprep.subr.mxu0 0.0
          %1162 = vmatpush1.msra.mxu0 0.0
          %1163 = vmatprep.subr.mxu0 0.0
          %1164 = vmatpush1.msra.mxu0 0.0
          %1165 = vmatprep.subr.mxu0 0.0
          %1166 = vmatpush1.msra.mxu0 0.0
          %1167 = vmatprep.subr.mxu0 0.0
          %1168 = vmatpush1.msra.mxu0 0.0
          %1169 = vmatprep.subr.mxu0 0.0
          %1170 = vmatpush1.msra.mxu0 0.0
          %1171 = vmatprep.subr.mxu0 0.0
          %1172 = vmatpush1.msra.mxu0 0.0
          %1173 = vmatprep.subr.mxu0 0.0
          %1174 = vmatpush1.msra.mxu0 0.0
          %1175 = vmatprep.subr.mxu0 0.0
          %1176 = vmatpush1.msra.mxu0 0.0
          %1177 = vmatprep.subr.mxu0 0.0
          %1178 = vmatpush1.msra.mxu0 0.0
          %1179 = vmatprep.subr.mxu0 0.0
          %1180 = vmatpush1.msra.mxu0 0.0
          %1181 = vmatprep.subr.mxu0 0.0
          %1182 = vmatpush1.msra.mxu0 0.0
          %1183 = vmatprep.subr.mxu0 0.0
          %1184 = vmatpush1.msra.mxu0 0.0
          %1185 = vmatprep.subr.mxu0 0.0
          %1186 = vmatpush1.msra.mxu0 0.0
          %1187 = vmatprep.subr.mxu0 0.0
          %1188 = vmatpush1.msra.mxu0 0.0
          %1189 = vmatprep.subr.mxu0 0.0
          %1190 = vmatpush1.msra.mxu0 0.0
          %1191 = vmatprep.subr.mxu0 0.0
          %1192 = vmatpush1.msra.mxu0 0.0
          %1193 = vmatprep.subr.mxu0 0.0
          %1194 = vmatpush1.msra.mxu0 0.0
          %1195 = vmatprep.subr.mxu0 0.0
          %1196 = vmatpush1.msra.mxu0 0.0
          %1197 = vmatprep.subr.mxu0 0.0
          %1198 = vmatpush1.msra.mxu0 0.0
          %1199 = vmatprep.subr.mxu0 0.0
          %1200 = vmatpush1.msra.mxu0 0.0
          %1201 = vmatprep.subr.mxu0 0.0
          %1202 = vmatpush1.msra.mxu0 0.0
          %1203 = vmatprep.subr.mxu0 0.0
          %1204 = vmatpush1.msra.mxu0 0.0
          %1205 = vmatprep.subr.mxu0 0.0
          %1206 = vmatpush1.msra.mxu0 0.0
          %1207 = vmatprep.subr.mxu0 0.0
          %1208 = vmatpush1.msra.mxu0 0.0
          %1209 = vmatprep.subr.mxu0 0.0
          %1210 = vmatpush1.msra.mxu0 0.0
          %1211 = vmatprep.mubr.f32.mxu0 0.0
          %1212 = vmatmul.mubr.f32.gmra.mrb[0].mxu0 %v1136
          %v1213 = vpop.f32.mrb[0].mxu0
          %v1214 = vadd.f32 0.0, %v1213
          %v1215 = vpop.f32.mrb[0].mxu0
          %v1216 = vadd.f32 0.0, %v1215
          %1217 = vmatprep.mubr.f32.mxu0 0.0
          %1218 = vmatmul.mubr.f32.gmra.mrb[0].mxu0 %v1139
          %v1219 = vpop.f32.mrb[0].mxu0
          %v1220 = vadd.f32 0.0, %v1219
          %v1221 = vpop.f32.mrb[0].mxu0
          %v1222 = vadd.f32 0.0, %v1221
          %1223 = vmatprep.mubr.f32.mxu0 0.0
          %1224 = vmatmul.mubr.f32.gmra.mrb[0].mxu0 %v1142
          %v1225 = vpop.f32.mrb[0].mxu0
          %v1226 = vadd.f32 0.0, %v1225
          %v1227 = vpop.f32.mrb[0].mxu0
          %v1228 = vadd.f32 0.0, %v1227
          %1229 = vmatprep.mubr.f32.mxu0 0.0
          %1230 = vmatmul.mubr.f32.gmra.mrb[0].mxu0 %v1145
          %v1231 = vpop.f32.mrb[0].mxu0
          %v1232 = vadd.f32 0.0, %v1231
          %v1233 = vpop.f32.mrb[0].mxu0
          %v1234 = vadd.f32 0.0, %v1233
          %1235 = vdwg.mxu0
          %vm1236 = vcmask 130048
          %v1238 = vsel %vm1236, %v1216, 0
          %v1241 = vsel %vm1236, %v1222, 0
          %v1244 = vsel %vm1236, %v1228, 0
          %v1247 = vsel %vm1236, %v1234, 0
          %1249 = vmatprep.subr.mxu0 %v1238
          %1250 = vmatpush1.xpose.msra.mxu0 %v1214
          %1251 = vmatprep.subr.mxu0 %v1241
          %1252 = vmatpush1.xpose.msra.mxu0 %v1220
          %1253 = vmatprep.subr.mxu0 %v1244
          %1254 = vmatpush1.xpose.msra.mxu0 %v1226
          %1255 = vmatprep.subr.mxu0 %v1247
          %1256 = vmatpush1.xpose.msra.mxu0 %v1232
          %1257 = vmatprep.subr.mxu0 0.0
          %1258 = vmatpush1.xpose.msra.mxu0 0.0
          %1259 = vmatprep.subr.mxu0 0.0
          %1260 = vmatpush1.xpose.msra.mxu0 0.0
          %1261 = vmatprep.subr.mxu0 0.0
          %1262 = vmatpush1.xpose.msra.mxu0 0.0
          %1263 = vmatprep.subr.mxu0 0.0
          %1264 = vmatpush1.xpose.msra.mxu0 0.0
          %1265 = vmatprep.subr.mxu0 0.0
          %1266 = vmatpush1.xpose.msra.mxu0 0.0
          %1267 = vmatprep.subr.mxu0 0.0
          %1268 = vmatpush1.xpose.msra.mxu0 0.0
          %1269 = vmatprep.subr.mxu0 0.0
          %1270 = vmatpush1.xpose.msra.mxu0 0.0
          %1271 = vmatprep.subr.mxu0 0.0
          %1272 = vmatpush1.xpose.msra.mxu0 0.0
          %1273 = vmatprep.subr.mxu0 0.0
          %1274 = vmatpush1.xpose.msra.mxu0 0.0
          %1275 = vmatprep.subr.mxu0 0.0
          %1276 = vmatpush1.xpose.msra.mxu0 0.0
          %1277 = vmatprep.subr.mxu0 0.0
          %1278 = vmatpush1.xpose.msra.mxu0 0.0
          %1279 = vmatprep.subr.mxu0 0.0
          %1280 = vmatpush1.xpose.msra.mxu0 0.0
          %1281 = vmatprep.subr.mxu0 0.0
          %1282 = vmatpush1.xpose.msra.mxu0 0.0
          %1283 = vmatprep.subr.mxu0 0.0
          %1284 = vmatpush1.xpose.msra.mxu0 0.0
          %1285 = vmatprep.subr.mxu0 0.0
          %1286 = vmatpush1.xpose.msra.mxu0 0.0
          %1287 = vmatprep.subr.mxu0 0.0
          %1288 = vmatpush1.xpose.msra.mxu0 0.0
          %1289 = vmatprep.subr.mxu0 0.0
          %1290 = vmatpush1.xpose.msra.mxu0 0.0
          %1291 = vmatprep.subr.mxu0 0.0
          %1292 = vmatpush1.xpose.msra.mxu0 0.0
          %1293 = vmatprep.subr.mxu0 0.0
          %1294 = vmatpush1.xpose.msra.mxu0 0.0
          %1295 = vmatprep.subr.mxu0 0.0
          %1296 = vmatpush1.xpose.msra.mxu0 0.0
          %1297 = vmatprep.subr.mxu0 0.0
          %1298 = vmatpush1.xpose.msra.mxu0 0.0
          %1299 = vmatprep.subr.mxu0 0.0
          %1300 = vmatpush1.xpose.msra.mxu0 0.0
          %1301 = vmatprep.subr.mxu0 0.0
          %1302 = vmatpush1.xpose.msra.mxu0 0.0
          %1303 = vmatprep.subr.mxu0 0.0
          %1304 = vmatpush1.xpose.msra.mxu0 0.0
          %1305 = vmatprep.subr.mxu0 0.0
          %1306 = vmatpush1.xpose.msra.mxu0 0.0
          %1307 = vmatprep.subr.mxu0 0.0
          %1308 = vmatpush1.xpose.msra.mxu0 0.0
          %1309 = vmatprep.subr.mxu0 0.0
          %1310 = vmatpush1.xpose.msra.mxu0 0.0
          %1311 = vmatprep.subr.mxu0 0.0
          %1312 = vmatpush1.xpose.msra.mxu0 0.0
          %1313 = vmatprep.mubr.f32.mxu0 %v1238
          %1314 = vmatmul.mubr.f32.gmra.mrb[0].mxu0 %v1214
          %v1315 = vpop.f32.mrb[0].mxu0
          %v1316 = vadd.f32 0.0, %v1315
          %v1317 = vpop.f32.mrb[0].mxu0
          %1318 = vmatprep.mubr.f32.mxu0 %v1241
          %1319 = vmatmul.mubr.f32.gmra.mrb[0].mxu0 %v1220
          %v1320 = vpop.f32.mrb[0].mxu0
          %v1321 = vadd.f32 0.0, %v1320
          %v1322 = vpop.f32.mrb[0].mxu0
          %1323 = vmatprep.mubr.f32.mxu0 %v1244
          %1324 = vmatmul.mubr.f32.gmra.mrb[0].mxu0 %v1226
          %v1325 = vpop.f32.mrb[0].mxu0
          %v1326 = vadd.f32 0.0, %v1325
          %v1327 = vpop.f32.mrb[0].mxu0
          %1328 = vmatprep.mubr.f32.mxu0 %v1247
          %1329 = vmatmul.mubr.f32.gmra.mrb[0].mxu0 %v1232
          %v1330 = vpop.f32.mrb[0].mxu0
          %v1331 = vadd.f32 0.0, %v1330
          %v1332 = vpop.f32.mrb[0].mxu0
          %1333 = vdwg.mxu0
          %v1334 = vsel %vm718, %v1316, 0.0
          %v1335 = vsel %vm719, %v1321, 0.0
          %v1336 = vsel %vm720, %v1326, 0.0
          %v1337 = vsel %vm721, %v1331, 0.0
          %v1338 = vsel %vm429, %v1334, 0.0
          %1339 = vadd.xlane.f32.xlu0 %v1338
          %v1340 = vpop.xlane.xlu0 %1339
          %v1341 = vsel %vm429, %v1335, 0.0
          %1342 = vadd.xlane.f32.xlu0 %v1341
          %v1343 = vpop.xlane.xlu0 %1342
          %v1344 = vsel %vm429, %v1336, 0.0
          %1345 = vadd.xlane.f32.xlu0 %v1344
          %v1346 = vpop.xlane.xlu0 %1345
          %v1347 = vsel %vm429, %v1337, 0.0
          %1348 = vadd.xlane.f32.xlu0 %v1347
          %v1349 = vpop.xlane.xlu0 %1348
          %v1350 = vadd.f32 %v1338, %v1341
          %v1351 = vadd.f32 %v1350, %v1344
          %v1352 = vadd.f32 %v1351, %v1347
          %v1353 = vrot.slane %v1352, 4
          %v1354 = vadd.f32 %v1352, %v1353
          %v1355 = vrot.slane %v1354, 2
          %v1356 = vadd.f32 %v1354, %v1355
          %v1357 = vrot.slane %v1356, 1
          %v1358 = vadd.f32 %v1356, %v1357
          %v1359 = vrsqrt.pop %v1340
          %v1360 = vrsqrt.pop %v1343
          %v1361 = vrsqrt.pop %v1346
          %v1362 = vrsqrt.pop %v1349
          %v1363 = vmin.f32 %v1359, 1e+12
          %v1364 = vmin.f32 %v1360, 1e+12
          %v1365 = vmin.f32 %v1361, 1e+12
          %v1366 = vmin.f32 %v1362, 1e+12
          %v1367 = vrsqrt.pop %v1358
          %v1368 = vmin.f32 %v1367, 1e+12
          %v1369 = vmul.f32 %v1316, %v1363
          %v1370 = vmul.f32 %v1321, %v1364
          %v1371 = vmul.f32 %v1326, %v1365
          %v1372 = vmul.f32 %v1331, %v1366
          %v1373 = vmul.f32 %v1369, %v1368
          %v1374 = vmul.f32 %v1370, %v1368
          %v1375 = vmul.f32 %v1371, %v1368
          %v1376 = vmul.f32 %v1372, %v1368
          %v1377 = vld [vmem:[%s385] sm:$0xff]
          %v1378 = vld [vmem:[%s385 + $0x8] sm:$0xff]
          %v1379 = vld [vmem:[%s385 + $0x10] sm:$0xff]
          %v1380 = vld [vmem:[%s385 + $0x18] sm:$0xff]
          %s1381 = sld [smem:[#allocation2 + $0x2]]
          %v1382 = vstv %s1381
          %v1383 = vmul.f32 %v1382, %v1373
          %v1384 = vmul.f32 %v1382, %v1374
          %v1385 = vmul.f32 %v1382, %v1375
          %v1386 = vmul.f32 %v1382, %v1376
          %v1387 = vadd.f32 %v1377, %v1383
          %v1388 = vadd.f32 %v1378, %v1384
          %v1389 = vadd.f32 %v1379, %v1385
          %v1390 = vadd.f32 %v1380, %v1386
          %1391 = vst.msk [vmem:[%s385] sm:$0xff] %vm429, %v1387
          %1392 = vst.msk [vmem:[%s385 + $0x8] sm:$0xff] %vm429, %v1388
          %1393 = vst.msk [vmem:[%s385 + $0x10] sm:$0xff] %vm429, %v1389
          %1394 = vst.msk [vmem:[%s385 + $0x18] sm:$0xff] %vm429, %v1390
          %s1395 = sld [smem:[#allocation2]]
          %s1396 = sld [smem:[#allocation2 + $0x1]]
          %s1397 = sadd.f32 %s1395, %s1396
          %s1398 = sld [smem:[#allocation2 + $0x2]]
          %s1399 = sadd.f32 %s1397, %s1398
          %v1400 = vld [vmem:[%s385] sm:$0xff]
          %v1401 = vld [vmem:[%s385 + $0x8] sm:$0xff]
          %v1402 = vld [vmem:[%s385 + $0x10] sm:$0xff]
          %v1403 = vld [vmem:[%s385 + $0x18] sm:$0xff]
          %s1404 = sadd.f32 %s1399, 1e-08
          %v1405 = vstv %s1404
          %v1406 = vrcp.pop %v1405
          %s1407 = vtos %v1406
          %v1408 = vstv %s1407
          %v1409 = vmul.f32 %v1400, %v1408
          %v1410 = vmul.f32 %v1401, %v1408
          %v1411 = vmul.f32 %v1402, %v1408
          %v1412 = vmul.f32 %v1403, %v1408
          %1413 = vst.msk [vmem:[%s385] sm:$0xff] %vm429, %v1409
          %1414 = vst.msk [vmem:[%s385 + $0x8] sm:$0xff] %vm429, %v1410
          %1415 = vst.msk [vmem:[%s385 + $0x10] sm:$0xff] %vm429, %v1411
          %1416 = vst.msk [vmem:[%s385 + $0x18] sm:$0xff] %vm429, %v1412
        $region56: #{skip_sc_aggregator.1} parent=47 // pred_fallthru
          _
        %s1417 = sand.u32 %s222, 1
        %s1418 = scalar_lea.sflag [#allocation3], %s1417
        %s1419 = sand.u32 %s222, 1
        %s1420 = smul.addr %s1419, 32
        %s1421 = scalar_lea.vmem [#allocation5], %s1420
        // Predicated region
        $region57: #{skip_sc_aggregator.1} parent=47 // pred_check
          %p1422 = pneg %p232
        $region58: #{skip_sc_aggregator.1} parent=47 // pred_check_branch
          %1424 = sbr.rel (%p1422) target = $region60
        $region59: #{skip_sc_aggregator.1} parent=47 // pred_region
          %s1426 = ssub.s32 512, 512
          %1427 = vsyncadd %s1418, %s1426
          %s1428 = smul.addr %s26, 4
          %s1429 = smul.addr %s1428, 128
          %s1430 = scalar_lea.hbm %s7, %s1429
          %s1431 = sshll.u32 %s1421, 4
          %s1432 = int_to_ptr.vmem [resolvable:$true] %s1431
          %1437 = dma.vmem_to_hbm [thread:$0]  %s1432, 512, %s1430, %s1418, 128, 128, 8
        $region60: #{skip_sc_aggregator.1} parent=47 // pred_fallthru
          _
      $region48: #{skip_sc_aggregator.1} parent=5 // pred_fallthru
        _
      %p1438 = scmp.le.s32.totalorder 2, %s17
      // Predicated region
      $region61: #{skip_sc_aggregator.1} parent=5 // pred_check
        %p1439 = pneg %p1438
      $region62: #{skip_sc_aggregator.1} parent=5 // pred_check_branch
        %1441 = sbr.rel (%p1439) target = $region64
      $region63: #{skip_sc_aggregator.1} parent=5 // pred_region
        %s1442 = ssub.s32 %s17, 2
        // Predicated region
        $region65: #{skip_sc_aggregator.1} parent=63 // pred_check
          %p1443 = pneg %p238
        $region66: #{skip_sc_aggregator.1} parent=63 // pred_check_branch
          %1445 = sbr.rel (%p1443) target = $region68
        $region67: #{skip_sc_aggregator.1} parent=63 // pred_region
          %s1446 = sand.u32 %s223, 1
          %s1447 = scalar_lea.sflag [#allocation3], %s1446
          %s1448 = sand.u32 %s223, 1
          %s1449 = smul.addr %s1448, 32
          %s1450 = scalar_lea.vmem [#allocation5], %s1449
          %1451 = dma.done %s1447, 512
        $region68: #{skip_sc_aggregator.1} parent=63 // pred_fallthru
          _
      $region64: #{skip_sc_aggregator.1} parent=5 // pred_fallthru
        _
    $region6: #{skip_sc_aggregator.1} parent=1 // loop_footer
      %s21 = sadd.s32 1, %s17
    $region7: #{skip_sc_aggregator.1} parent=1 // loop_footer_branch
      %16 = sbr.rel target = $region3
    $region8: #{skip_sc_aggregator.1} parent=1 // loop_exit
      _
    %1452 = vsyncpa [#allocation3], 1
    %s1453 = scalar_lea.sflag [#allocation3], 1
    %1454 = vsyncpa %s1453, 1
    %1455 = vsyncpa [#allocation4], 1
    %s1456 = scalar_lea.sflag [#allocation4], 1
    %1457 = vsyncpa %s1456, 1

</llo_original>
